<compile_context>
chip_gen: v5e
topology: v5e:2x2
jax: 0.10.0
libtpu: 0.0.40
codegen_flags: <defaults>
</compile_context>

<pallas_src>
import numpy as np
import jax
import jax.numpy as jnp
from jax.experimental import pallas as pl
from jax.experimental.pallas import tpu as pltpu

SOS_token = 2


# ----------------------------------------------------------------------------
# helpers
# ----------------------------------------------------------------------------
def _num_batch_blocks(batch_size):
    """Batch-block grid size.

    v7x has 2 TensorCores/chip -> split the (independent per-row) recurrence
    across them.  v5e/v6e have 1 TC, where a grid split is pure overhead, so
    keep grid=(1,) there.  Only split when each block stays sublane-aligned
    for the bf16 operands (B/2 multiple of 16).
    """
    try:
        kind = jax.devices()[0].device_kind.lower()
    except Exception:
        return 1
    if "v7" in kind and batch_size % 32 == 0:
        return 2
    return 1


def _vmem_limit_bytes(in_arrays, out_bytes, scratch_bytes):
    # actual residency (double-buffered blocks) + headroom, clamped to sane range
    n_in = sum(int(a.size) * a.dtype.itemsize for a in in_arrays)
    total = 2 * (n_in + out_bytes) + scratch_bytes + (4 << 20)
    return int(min(max(total, 16 << 20), 100 << 20))


def _gru_gates(gi, gh, h, E):
    # PyTorch nn.GRU gate order [r, z, n]; gate math in f32.
    r = jax.nn.sigmoid(gi[:, :E] + gh[:, :E])
    z = jax.nn.sigmoid(gi[:, E:2 * E] + gh[:, E:2 * E])
    n = jnp.tanh(gi[:, 2 * E:] + r * gh[:, 2 * E:])
    return (1.0 - z) * n + z * h


# ----------------------------------------------------------------------------
# Kernel 1 (teacher forcing): projector + batched input gates + serial GRU
# carry + batched vocab logits, one kernel per batch block.
# ----------------------------------------------------------------------------
def _tf_decode_kernel(enc_ref, pw_ref, pb_ref, emb_ref, wih_ref, bgi_ref,
                      whh_ref, bgh_ref, ct_ref, hid_ref, vocab_ref,
                      gi_scr, h_scr):
    T, Bb, E = hid_ref.shape
    V = ct_ref.shape[1]

    # hidden0 = relu(encode_hidden @ Wp^T + bp)   (bf16 MXU, f32 accumulate)
    h0 = jnp.maximum(
        jnp.dot(enc_ref[...], pw_ref[...], preferred_element_type=jnp.float32)
        + pb_ref[...], 0.0)

    # x-side gates for all timesteps: one (T*Bb, E) x (E, 3E) bf16 MXU matmul
    # (no sequential dependency -> hoisted out of the carry loop).
    emb_flat = emb_ref[...].reshape(T * Bb, E)
    gi_scr[...] = (jnp.dot(emb_flat, wih_ref[...],
                           preferred_element_type=jnp.float32) + bgi_ref[...])

    # loop-invariant hoists off the serial critical path
    whh = whh_ref[...]                                   # (E, 3E) bf16
    bgh = jnp.broadcast_to(bgh_ref[...], (Bb, 3 * E))    # broadcast once

    # serial recurrence: only the tiny gh matmul + gate nonlinearities per step
    def step(t, h):
        row = pl.multiple_of(t * Bb, Bb)
        gi = gi_scr[pl.ds(row, Bb), :]                   # (Bb, 3E) f32
        gh = jnp.dot(h.astype(jnp.bfloat16), whh,
                     preferred_element_type=jnp.float32) + bgh
        h_new = _gru_gates(gi, gh, h, E)
        h_scr[pl.ds(row, Bb), :] = h_new
        return h_new

    jax.lax.fori_loop(0, T, step, h0, unroll=min(T, 8))

    # bulk writebacks off the serial path; vocab logits as one
    # (T*Bb, E) x (E, V) bf16 MXU matmul.  attend_vocab returns the
    # *unnormalized* scores (scores_), so no softmax.
    hid_ref[...] = h_scr[...].reshape(T, Bb, E)
    vocab_ref[...] = jnp.dot(
        h_scr[...].astype(jnp.bfloat16), ct_ref[...],
        preferred_element_type=jnp.float32).reshape(T, Bb, V)


def tf_decode(enc_bf, proj_w_t, proj_b, embeds_bf, wih_all, b_gi,
              whh_all, b_gh, c_t):
    T, B, E = embeds_bf.shape
    V = c_t.shape[1]
    nb = _num_batch_blocks(B)
    Bb = B // nb
    vmem = pltpu.MemorySpace.VMEM

    def rep(i):           # replicated (whole-array) operands
        return (0, 0)

    in_specs = [
        pl.BlockSpec((Bb, 2 * E), lambda i: (i, 0), memory_space=vmem),    # enc
        pl.BlockSpec((2 * E, E), rep, memory_space=vmem),                  # Wp^T
        pl.BlockSpec((1, E), rep, memory_space=vmem),                      # bp
        pl.BlockSpec((T, Bb, E), lambda i: (0, i, 0), memory_space=vmem),  # embeds
        pl.BlockSpec((E, 3 * E), rep, memory_space=vmem),                  # W_ih^T
        pl.BlockSpec((1, 3 * E), rep, memory_space=vmem),                  # b_gi
        pl.BlockSpec((E, 3 * E), rep, memory_space=vmem),                  # W_hh^T
        pl.BlockSpec((1, 3 * E), rep, memory_space=vmem),                  # b_gh
        pl.BlockSpec((E, V), rep, memory_space=vmem),                      # C^T
    ]
    out_specs = [
        pl.BlockSpec((T, Bb, E), lambda i: (0, i, 0), memory_space=vmem),
        pl.BlockSpec((T, Bb, V), lambda i: (0, i, 0), memory_space=vmem),
    ]
    scratch = [pltpu.VMEM((T * Bb, 3 * E), jnp.float32),
               pltpu.VMEM((T * Bb, E), jnp.float32)]

    args = (enc_bf, proj_w_t, proj_b, embeds_bf, wih_all, b_gi, whh_all,
            b_gh, c_t)
    out_bytes = T * B * (E + V) * 4
    scr_bytes = T * Bb * (3 * E + E) * 4
    params = pltpu.CompilerParams(
        dimension_semantics=("parallel",),
        vmem_limit_bytes=_vmem_limit_bytes(args, out_bytes, scr_bytes))

    return pl.pallas_call(
        _tf_decode_kernel,
        out_shape=(jax.ShapeDtypeStruct((T, B, E), jnp.float32),
                   jax.ShapeDtypeStruct((T, B, V), jnp.float32)),
        grid_spec=pltpu.PrefetchScalarGridSpec(
            num_scalar_prefetch=0, grid=(nb,),
            in_specs=in_specs, out_specs=out_specs, scratch_shapes=scratch),
        compiler_params=params,
    )(*args)


# ----------------------------------------------------------------------------
# Kernel 2 (greedy decode): single fused kernel per batch block; embedding
# table resident in VMEM, argmax (topk(1)) and next-token embedding fetch
# done in-kernel, no per-step relaunch / weight re-DMA.
# ----------------------------------------------------------------------------
def _greedy_decode_kernel(enc_ref, pw_ref, pb_ref, c_ref, ct_ref, wih_ref,
                          bgi_ref, whh_ref, bgh_ref, hid_ref, vocab_ref):
    T, Bb, E = hid_ref.shape
    V = ct_ref.shape[1]

    h0 = jnp.maximum(
        jnp.dot(enc_ref[...], pw_ref[...], preferred_element_type=jnp.float32)
        + pb_ref[...], 0.0)
    tok0 = jnp.full((Bb, 1), SOS_token, jnp.int32)
    vocab_iota = jax.lax.broadcasted_iota(jnp.int32, (Bb, V), 1)

    # loop-invariant hoists off the serial critical path
    c_tbl = c_ref[...]                                    # (V, E) bf16
    ct = ct_ref[...]                                      # (E, V) bf16
    wih = wih_ref[...]
    whh = whh_ref[...]
    bgi = jnp.broadcast_to(bgi_ref[...], (Bb, 3 * E))
    bgh = jnp.broadcast_to(bgh_ref[...], (Bb, 3 * E))

    def step(t, carry):
        h, tok = carry
        # Embedding fetch kept as a bf16 one-hot (Bb,V)x(V,E) MXU matmul on the
        # VMEM-resident table (dropout == identity); a per-row dynamic-slice
        # gather would save the MACs but needs vector->scalar index extraction
        # that does not lower reliably, so the MXU route is used.
        onehot = (vocab_iota == tok).astype(jnp.bfloat16)
        x = jnp.dot(onehot, c_tbl, preferred_element_type=jnp.float32)
        gi = jnp.dot(x.astype(jnp.bfloat16), wih,
                     preferred_element_type=jnp.float32) + bgi
        gh = jnp.dot(h.astype(jnp.bfloat16), whh,
                     preferred_element_type=jnp.float32) + bgh
        h_new = _gru_gates(gi, gh, h, E)
        logits = jnp.dot(h_new.astype(jnp.bfloat16), ct,
                         preferred_element_type=jnp.float32)
        hid_ref[t] = h_new
        vocab_ref[t] = logits
        # greedy next token = first index achieving the row max (== topk(1))
        m = jnp.max(logits, axis=1, keepdims=True)
        nxt = jnp.min(jnp.where(logits >= m, vocab_iota, V),
                      axis=1, keepdims=True).astype(jnp.int32)
        return h_new, nxt

    jax.lax.fori_loop(0, T, step, (h0, tok0), unroll=min(T, 8))


def greedy_decode(enc_bf, proj_w_t, proj_b, c_bf, c_t, wih_all, b_gi,
                  whh_all, b_gh, T):
    B = enc_bf.shape[0]
    E = proj_w_t.shape[1]
    V = c_t.shape[1]
    nb = _num_batch_blocks(B)
    Bb = B // nb
    vmem = pltpu.MemorySpace.VMEM

    def rep(i):
        return (0, 0)

    in_specs = [
        pl.BlockSpec((Bb, 2 * E), lambda i: (i, 0), memory_space=vmem),  # enc
        pl.BlockSpec((2 * E, E), rep, memory_space=vmem),                # Wp^T
        pl.BlockSpec((1, E), rep, memory_space=vmem),                    # bp
        pl.BlockSpec((V, E), rep, memory_space=vmem),                    # C
        pl.BlockSpec((E, V), rep, memory_space=vmem),                    # C^T
        pl.BlockSpec((E, 3 * E), rep, memory_space=vmem),                # W_ih^T
        pl.BlockSpec((1, 3 * E), rep, memory_space=vmem),                # b_gi
        pl.BlockSpec((E, 3 * E), rep, memory_space=vmem),                # W_hh^T
        pl.BlockSpec((1, 3 * E), rep, memory_space=vmem),                # b_gh
    ]
    out_specs = [
        pl.BlockSpec((T, Bb, E), lambda i: (0, i, 0), memory_space=vmem),
        pl.BlockSpec((T, Bb, V), lambda i: (0, i, 0), memory_space=vmem),
    ]
    args = (enc_bf, proj_w_t, proj_b, c_bf, c_t, wih_all, b_gi, whh_all, b_gh)
    out_bytes = T * B * (E + V) * 4
    params = pltpu.CompilerParams(
        dimension_semantics=("parallel",),
        vmem_limit_bytes=_vmem_limit_bytes(args, out_bytes, 0))

    return pl.pallas_call(
        _greedy_decode_kernel,
        out_shape=(jax.ShapeDtypeStruct((T, B, E), jnp.float32),
                   jax.ShapeDtypeStruct((T, B, V), jnp.float32)),
        grid_spec=pltpu.PrefetchScalarGridSpec(
            num_scalar_prefetch=0, grid=(nb,),
            in_specs=in_specs, out_specs=out_specs),
        compiler_params=params,
    )(*args)


# ----------------------------------------------------------------------------
# Module wrapper
# ----------------------------------------------------------------------------
class LocalMemoryDecoder:
    def __init__(self, num_vocab, embedding_dim, hop, dropout, key):
        self.num_vocab = num_vocab
        self.embedding_dim = embedding_dim
        self.max_hops = hop
        self.dropout = dropout  # identity in eval mode (deterministic kernel)
        E, V = embedding_dim, num_vocab
        ks = jax.random.split(key, 7)
        s = 0.1
        self.C = jax.random.normal(ks[0], (V, E), jnp.float32) * s          # shared embedding
        self.proj_w = jax.random.normal(ks[1], (E, 2 * E), jnp.float32) * s  # Linear(2E, E)
        self.proj_b = jax.random.normal(ks[2], (E,), jnp.float32) * s
        self.w_ih = jax.random.normal(ks[3], (3 * E, E), jnp.float32) * s    # GRU gates [r,z,n]
        self.w_hh = jax.random.normal(ks[4], (3 * E, E), jnp.float32) * s
        self.b_ih = jax.random.normal(ks[5], (3 * E,), jnp.float32) * s
        self.b_hh = jax.random.normal(ks[6], (3 * E,), jnp.float32) * s

        # ---- fused / pre-transposed bf16 kernel views (MXU is bf16-native) ----
        self._c_bf = self.C.astype(jnp.bfloat16)          # (V, E)
        self._ct_bf = self._c_bf.T                        # (E, V)
        self._proj_w_t_bf = self.proj_w.T.astype(jnp.bfloat16)  # (2E, E)
        self._proj_b = self.proj_b.reshape(1, E)                 # f32
        self._wih_bf = self.w_ih.T.astype(jnp.bfloat16)   # (E, 3E), cols = [r|z|n]
        self._whh_bf = self.w_hh.T.astype(jnp.bfloat16)   # (E, 3E)
        # pre-summed biases (f32): r/z biases folded into the x-side bias;
        # b_hh_n stays on the h-side because it is multiplied by r.
        b_gi = jnp.concatenate([self.b_ih[:E] + self.b_hh[:E],
                                self.b_ih[E:2 * E] + self.b_hh[E:2 * E],
                                self.b_ih[2 * E:]])
        b_gh = jnp.concatenate([jnp.zeros((2 * E,), jnp.float32),
                                self.b_hh[2 * E:]])
        self._b_gi = b_gi.reshape(1, 3 * E)
        self._b_gh = b_gh.reshape(1, 3 * E)

    def forward(self, extKnow, story_size, story_lengths, copy_list,
                encode_hidden, target_batches, max_target_length, batch_size,
                use_teacher_forcing, get_decoded_words, global_pointer):
        T, B, E = max_target_length, batch_size, self.embedding_dim
        mem_len = story_size[1]
        enc_bf = encode_hidden.astype(jnp.bfloat16)

        if use_teacher_forcing:
            sos = jnp.full((B, 1), SOS_token, jnp.int32)
            inp = jnp.concatenate(
                [sos, target_batches[:, :T - 1].astype(jnp.int32)], axis=1)   # (B, T)
            embeds_bf = jnp.transpose(self._c_bf[inp], (1, 0, 2))             # (T, B, E)
            hid_all, vocab_logits = tf_decode(
                enc_bf, self._proj_w_t_bf, self._proj_b, embeds_bf,
                self._wih_bf, self._b_gi, self._whh_bf, self._b_gh,
                self._ct_bf)
        else:
            hid_all, vocab_logits = greedy_decode(
                enc_bf, self._proj_w_t_bf, self._proj_b, self._c_bf,
                self._ct_bf, self._wih_bf, self._b_gi, self._whh_bf,
                self._b_gh, T)

        if extKnow is not None:
            ptr_logits = jnp.stack(
                [extKnow(hid_all[t], global_pointer)[1] for t in range(T)])
        else:
            # TODO(synk): extKnow is an external module (GLMP ExternalKnowledge) passed in
            # at call time, not part of this module; pointer logits are zero-filled here.
            ptr_logits = jnp.zeros((T, B, mem_len), jnp.float32)

        # TODO(synk): get_decoded_words string decoding (lang.index2word / copy_list /
        # topk masking) is host-side Python over vocabulary strings, not TPU-kernel work.
        decoded_fine, decoded_coarse = [], []
        return vocab_logits, ptr_logits, decoded_fine, decoded_coarse


# ----------------------------------------------------------------------------
# Pure-JAX references for correctness checking.  They mirror the kernels'
# numerics exactly: bf16 MXU operands with f32 accumulation, f32 gate math,
# PyTorch GRU gate order [r,z,n] with the same bias folding.
# ----------------------------------------------------------------------------
def _reference_teacher_forcing(dec, encode_hidden, target_batches, T, B):
    E = dec.embedding_dim
    bf, f32 = jnp.bfloat16, jnp.float32
    h = jnp.maximum(
        jnp.dot(encode_hidden.astype(bf), dec._proj_w_t_bf,
                preferred_element_type=f32) + dec._proj_b, 0.0)
    sos = jnp.full((B, 1), SOS_token, jnp.int32)
    inp = jnp.concatenate([sos, target_batches[:, :T - 1].astype(jnp.int32)], axis=1)
    outs = []
    for t in range(T):
        x = dec._c_bf[inp[:, t]]
        gi = jnp.dot(x, dec._wih_bf, preferred_element_type=f32) + dec._b_gi
        gh = jnp.dot(h.astype(bf), dec._whh_bf, preferred_element_type=f32) + dec._b_gh
        r = jax.nn.sigmoid(gi[:, :E] + gh[:, :E])
        z = jax.nn.sigmoid(gi[:, E:2 * E] + gh[:, E:2 * E])
        n = jnp.tanh(gi[:, 2 * E:] + r * gh[:, 2 * E:])
        h = (1.0 - z) * n + z * h
        outs.append(jnp.dot(h.astype(bf), dec._ct_bf, preferred_element_type=f32))
    return jnp.stack(outs)


def _reference_greedy(dec, encode_hidden, T, B):
    E = dec.embedding_dim
    bf, f32 = jnp.bfloat16, jnp.float32
    h = jnp.maximum(
        jnp.dot(encode_hidden.astype(bf), dec._proj_w_t_bf,
                preferred_element_type=f32) + dec._proj_b, 0.0)
    tok = jnp.full((B,), SOS_token, jnp.int32)
    outs = []
    for t in range(T):
        x = dec._c_bf[tok]
        gi = jnp.dot(x, dec._wih_bf, preferred_element_type=f32) + dec._b_gi
        gh = jnp.dot(h.astype(bf), dec._whh_bf, preferred_element_type=f32) + dec._b_gh
        r = jax.nn.sigmoid(gi[:, :E] + gh[:, :E])
        z = jax.nn.sigmoid(gi[:, E:2 * E] + gh[:, E:2 * E])
        n = jnp.tanh(gi[:, 2 * E:] + r * gh[:, 2 * E:])
        h = (1.0 - z) * n + z * h
        logits = jnp.dot(h.astype(bf), dec._ct_bf, preferred_element_type=f32)
        outs.append(logits)
        tok = jnp.argmax(logits, axis=1).astype(jnp.int32)
    return jnp.stack(outs)


if __name__ == "__main__":
    key = jax.random.PRNGKey(0)
    # E and V chosen as multiples of 128 so gate slices are lane-aligned and
    # the per-step hidden/logits stores are lane-dense; B is sublane-aligned.
    B, E, V, T, M, hop = 8, 128, 256, 6, 10, 3
    k1, k2, k3 = jax.random.split(key, 3)

    dec = LocalMemoryDecoder(num_vocab=V, embedding_dim=E, hop=hop,
                             dropout=0.1, key=k1)
    encode_hidden = jax.random.normal(k2, (B, 2 * E), jnp.float32)
    target_batches = jax.random.randint(k3, (B, T), 0, V, jnp.int32)
    story_size = (B, M)
    story_lengths = jnp.full((B,), M, jnp.int32)

    # teacher-forcing path: single fused kernel
    vocab_logits, ptr_logits, df, dc = dec.forward(
        extKnow=None, story_size=story_size, story_lengths=story_lengths,
        copy_list=None, encode_hidden=encode_hidden,
        target_batches=target_batches, max_target_length=T, batch_size=B,
        use_teacher_forcing=True, get_decoded_words=False, global_pointer=None)
    jax.block_until_ready((vocab_logits, ptr_logits))
    assert vocab_logits.shape == (T, B, V)
    assert ptr_logits.shape == (T, B, M)

    ref_tf = _reference_teacher_forcing(dec, encode_hidden, target_batches, T, B)
    np.testing.assert_allclose(np.asarray(vocab_logits), np.asarray(ref_tf),
                               atol=3e-3, rtol=3e-3)

    # greedy (non-teacher-forcing) path: fused kernel with in-kernel argmax +
    # embedding fetch
    v2, p2, _, _ = dec.forward(None, story_size, story_lengths, None,
                               encode_hidden, target_batches, T, B,
                               False, False, None)
    jax.block_until_ready((v2, p2))
    ref_gd = _reference_greedy(dec, encode_hidden, T, B)
    np.testing.assert_allclose(np.asarray(v2), np.asarray(ref_gd),
                               atol=3e-3, rtol=3e-3)

    print("KERNEL_OK")
</pallas_src>

<mosaic_0001>
module attributes {stable_mosaic.version = 11 : i64} {
  func.func @_tf_decode_kernel(%arg0: i32, %arg1: memref<8x256xbf16, #tpu.memory_space<vmem>>, %arg2: memref<256x128xbf16, #tpu.memory_space<vmem>>, %arg3: memref<1x128xf32, #tpu.memory_space<vmem>>, %arg4: memref<6x8x128xbf16, #tpu.memory_space<vmem>>, %arg5: memref<128x384xbf16, #tpu.memory_space<vmem>>, %arg6: memref<1x384xf32, #tpu.memory_space<vmem>>, %arg7: memref<128x384xbf16, #tpu.memory_space<vmem>>, %arg8: memref<1x384xf32, #tpu.memory_space<vmem>>, %arg9: memref<128x256xbf16, #tpu.memory_space<vmem>>, %arg10: memref<6x8x128xf32, #tpu.memory_space<vmem>>, %arg11: memref<6x8x256xf32, #tpu.memory_space<vmem>>, %arg12: memref<48x384xf32, #tpu.memory_space<vmem>>, %arg13: memref<48x128xf32, #tpu.memory_space<vmem>>) attributes {dimension_semantics = [#tpu.dimension_semantics<parallel>], iteration_bounds = array<i64: 1>, scalar_prefetch = 0 : i64, scratch_operands = 2 : i64, tpu.core_type = #tpu.core_type<tc>, window_params = [{transform_indices = @transform_0, window_bounds = array<i64: 8, 256>}, {pipeline_mode = #tpu.pipeline_mode<synchronous>, transform_indices = @transform_1, window_bounds = array<i64: 256, 128>}, {pipeline_mode = #tpu.pipeline_mode<synchronous>, transform_indices = @transform_2, window_bounds = array<i64: 1, 128>}, {transform_indices = @transform_3, window_bounds = array<i64: 6, 8, 128>}, {pipeline_mode = #tpu.pipeline_mode<synchronous>, transform_indices = @transform_4, window_bounds = array<i64: 128, 384>}, {pipeline_mode = #tpu.pipeline_mode<synchronous>, transform_indices = @transform_5, window_bounds = array<i64: 1, 384>}, {pipeline_mode = #tpu.pipeline_mode<synchronous>, transform_indices = @transform_6, window_bounds = array<i64: 128, 384>}, {pipeline_mode = #tpu.pipeline_mode<synchronous>, transform_indices = @transform_7, window_bounds = array<i64: 1, 384>}, {pipeline_mode = #tpu.pipeline_mode<synchronous>, transform_indices = @transform_8, window_bounds = array<i64: 128, 256>}, {transform_indices = @transform_9, window_bounds = array<i64: 6, 8, 128>}, {transform_indices = @transform_10, window_bounds = array<i64: 6, 8, 256>}]} {
    %c0 = arith.constant 0 : index
    %c0_0 = arith.constant 0 : index
    %0 = vector.load %arg1[%c0, %c0_0] : memref<8x256xbf16, #tpu.memory_space<vmem>>, vector<8x256xbf16>
    %c0_1 = arith.constant 0 : index
    %c0_2 = arith.constant 0 : index
    %1 = vector.load %arg2[%c0_1, %c0_2] : memref<256x128xbf16, #tpu.memory_space<vmem>>, vector<256x128xbf16>
    %cst = arith.constant dense<0.000000e+00> : vector<8x128xf32>
    %2 = tpu.matmul %0, %1, %cst {dimension_numbers = #tpu.dot_dimension_numbers<[1], [0], [0], [1], [0, 0, 1, 1], [], []>} : vector<8x256xbf16>, vector<256x128xbf16>, vector<8x128xf32> -> vector<8x128xf32>
    %c0_3 = arith.constant 0 : index
    %c0_4 = arith.constant 0 : index
    %3 = vector.load %arg3[%c0_3, %c0_4] : memref<1x128xf32, #tpu.memory_space<vmem>>, vector<1x128xf32>
    %4 = vector.broadcast %3 : vector<1x128xf32> to vector<8x128xf32>
    %5 = arith.addf %2, %4 : vector<8x128xf32>
    %cst_5 = arith.constant 0.000000e+00 : f32
    %6 = vector.broadcast %cst_5 : f32 to vector<8x128xf32>
    %7 = arith.maximumf %5, %6 : vector<8x128xf32>
    %c0_6 = arith.constant 0 : index
    %c0_7 = arith.constant 0 : index
    %c0_8 = arith.constant 0 : index
    %8 = vector.load %arg4[%c0_6, %c0_7, %c0_8] : memref<6x8x128xbf16, #tpu.memory_space<vmem>>, vector<6x8x128xbf16>
    %9 = vector.shape_cast %8 : vector<6x8x128xbf16> to vector<48x128xbf16>
    %c0_9 = arith.constant 0 : index
    %c0_10 = arith.constant 0 : index
    %10 = vector.load %arg5[%c0_9, %c0_10] : memref<128x384xbf16, #tpu.memory_space<vmem>>, vector<128x384xbf16>
    %cst_11 = arith.constant dense<0.000000e+00> : vector<48x384xf32>
    %11 = tpu.matmul %9, %10, %cst_11 {dimension_numbers = #tpu.dot_dimension_numbers<[1], [0], [0], [1], [0, 0, 1, 1], [], []>} : vector<48x128xbf16>, vector<128x384xbf16>, vector<48x384xf32> -> vector<48x384xf32>
    %c0_12 = arith.constant 0 : index
    %c0_13 = arith.constant 0 : index
    %12 = vector.load %arg6[%c0_12, %c0_13] : memref<1x384xf32, #tpu.memory_space<vmem>>, vector<1x384xf32>
    %13 = vector.broadcast %12 : vector<1x384xf32> to vector<48x384xf32>
    %14 = arith.addf %11, %13 : vector<48x384xf32>
    %c0_14 = arith.constant 0 : index
    %c0_15 = arith.constant 0 : index
    %15 = vector.load %arg12[%c0_14, %c0_15] : memref<48x384xf32, #tpu.memory_space<vmem>>, vector<48x384xf32>
    tpu.vector_store %arg12[%c0_14, %c0_15], %14 {strides = array<i32>} : memref<48x384xf32, #tpu.memory_space<vmem>>, vector<48x384xf32>,
    %c0_16 = arith.constant 0 : index
    %c0_17 = arith.constant 0 : index
    %16 = vector.load %arg7[%c0_16, %c0_17] : memref<128x384xbf16, #tpu.memory_space<vmem>>, vector<128x384xbf16>
    %c0_18 = arith.constant 0 : index
    %c0_19 = arith.constant 0 : index
    %17 = vector.load %arg8[%c0_18, %c0_19] : memref<1x384xf32, #tpu.memory_space<vmem>>, vector<1x384xf32>
    %18 = vector.shape_cast %17 : vector<1x384xf32> to vector<1x384xf32>
    %19 = vector.broadcast %18 : vector<1x384xf32> to vector<8x384xf32>
    %c0_i32 = arith.constant 0 : i32
    %c8_i32 = arith.constant 8 : i32
    %20 = arith.muli %c0_i32, %c8_i32 : i32
    %21 = tpu.assume_multiple %20, 8 : i32
    %22 = arith.index_cast %21 : i32 to index
    %c0_20 = arith.constant 0 : index
    %23 = vector.load %arg12[%22, %c0_20] : memref<48x384xf32, #tpu.memory_space<vmem>>, vector<8x384xf32>
    %24 = arith.truncf %7 : vector<8x128xf32> to vector<8x128xbf16>
    %cst_21 = arith.constant dense<0.000000e+00> : vector<8x384xf32>
    %25 = tpu.matmul %24, %16, %cst_21 {dimension_numbers = #tpu.dot_dimension_numbers<[1], [0], [0], [1], [0, 0, 1, 1], [], []>} : vector<8x128xbf16>, vector<128x384xbf16>, vector<8x384xf32> -> vector<8x384xf32>
    %26 = arith.addf %25, %19 : vector<8x384xf32>
    %27 = vector.extract_strided_slice %23 {offsets = [0, 0], sizes = [8, 128], strides = [1, 1]} : vector<8x384xf32> to vector<8x128xf32>
    %28 = vector.extract_strided_slice %26 {offsets = [0, 0], sizes = [8, 128], strides = [1, 1]} : vector<8x384xf32> to vector<8x128xf32>
    %29 = arith.addf %27, %28 : vector<8x128xf32>
    %30 = arith.negf %29 : vector<8x128xf32>
    %31 = math.exp %30 : vector<8x128xf32>
    %cst_22 = arith.constant 1.000000e+00 : f32
    %32 = vector.broadcast %cst_22 : f32 to vector<8x128xf32>
    %33 = arith.addf %32, %31 : vector<8x128xf32>
    %34 = arith.divf %32, %33 : vector<8x128xf32>
    %35 = vector.extract_strided_slice %23 {offsets = [0, 128], sizes = [8, 128], strides = [1, 1]} : vector<8x384xf32> to vector<8x128xf32>
    %36 = vector.extract_strided_slice %26 {offsets = [0, 128], sizes = [8, 128], strides = [1, 1]} : vector<8x384xf32> to vector<8x128xf32>
    %37 = arith.addf %35, %36 : vector<8x128xf32>
    %38 = arith.negf %37 : vector<8x128xf32>
    %39 = math.exp %38 : vector<8x128xf32>
    %cst_23 = arith.constant 1.000000e+00 : f32
    %40 = vector.broadcast %cst_23 : f32 to vector<8x128xf32>
    %41 = arith.addf %40, %39 : vector<8x128xf32>
    %42 = arith.divf %40, %41 : vector<8x128xf32>
    %43 = vector.extract_strided_slice %23 {offsets = [0, 256], sizes = [8, 128], strides = [1, 1]} : vector<8x384xf32> to vector<8x128xf32>
    %44 = vector.extract_strided_slice %26 {offsets = [0, 256], sizes = [8, 128], strides = [1, 1]} : vector<8x384xf32> to vector<8x128xf32>
    %45 = arith.mulf %34, %44 : vector<8x128xf32>
    %46 = arith.addf %43, %45 : vector<8x128xf32>
    %47 = math.tanh %46 : vector<8x128xf32>
    %cst_24 = arith.constant 1.000000e+00 : f32
    %48 = vector.broadcast %cst_24 : f32 to vector<8x128xf32>
    %49 = arith.subf %48, %42 : vector<8x128xf32>
    %50 = arith.mulf %49, %47 : vector<8x128xf32>
    %51 = arith.mulf %42, %7 : vector<8x128xf32>
    %52 = arith.addf %50, %51 : vector<8x128xf32>
    %53 = arith.index_cast %21 : i32 to index
    %c0_25 = arith.constant 0 : index
    %54 = vector.load %arg13[%53, %c0_25] : memref<48x128xf32, #tpu.memory_space<vmem>>, vector<8x128xf32>
    tpu.vector_store %arg13[%53, %c0_25], %52 {strides = array<i32>} : memref<48x128xf32, #tpu.memory_space<vmem>>, vector<8x128xf32>,
    %c1_i32 = arith.constant 1 : i32
    %c8_i32_26 = arith.constant 8 : i32
    %55 = arith.muli %c1_i32, %c8_i32_26 : i32
    %56 = tpu.assume_multiple %55, 8 : i32
    %57 = arith.index_cast %56 : i32 to index
    %c0_27 = arith.constant 0 : index
    %58 = vector.load %arg12[%57, %c0_27] : memref<48x384xf32, #tpu.memory_space<vmem>>, vector<8x384xf32>
    %59 = arith.truncf %52 : vector<8x128xf32> to vector<8x128xbf16>
    %cst_28 = arith.constant dense<0.000000e+00> : vector<8x384xf32>
    %60 = tpu.matmul %59, %16, %cst_28 {dimension_numbers = #tpu.dot_dimension_numbers<[1], [0], [0], [1], [0, 0, 1, 1], [], []>} : vector<8x128xbf16>, vector<128x384xbf16>, vector<8x384xf32> -> vector<8x384xf32>
    %61 = arith.addf %60, %19 : vector<8x384xf32>
    %62 = vector.extract_strided_slice %58 {offsets = [0, 0], sizes = [8, 128], strides = [1, 1]} : vector<8x384xf32> to vector<8x128xf32>
    %63 = vector.extract_strided_slice %61 {offsets = [0, 0], sizes = [8, 128], strides = [1, 1]} : vector<8x384xf32> to vector<8x128xf32>
    %64 = arith.addf %62, %63 : vector<8x128xf32>
    %65 = arith.negf %64 : vector<8x128xf32>
    %66 = math.exp %65 : vector<8x128xf32>
    %cst_29 = arith.constant 1.000000e+00 : f32
    %67 = vector.broadcast %cst_29 : f32 to vector<8x128xf32>
    %68 = arith.addf %67, %66 : vector<8x128xf32>
    %69 = arith.divf %67, %68 : vector<8x128xf32>
    %70 = vector.extract_strided_slice %58 {offsets = [0, 128], sizes = [8, 128], strides = [1, 1]} : vector<8x384xf32> to vector<8x128xf32>
    %71 = vector.extract_strided_slice %61 {offsets = [0, 128], sizes = [8, 128], strides = [1, 1]} : vector<8x384xf32> to vector<8x128xf32>
    %72 = arith.addf %70, %71 : vector<8x128xf32>
    %73 = arith.negf %72 : vector<8x128xf32>
    %74 = math.exp %73 : vector<8x128xf32>
    %cst_30 = arith.constant 1.000000e+00 : f32
    %75 = vector.broadcast %cst_30 : f32 to vector<8x128xf32>
    %76 = arith.addf %75, %74 : vector<8x128xf32>
    %77 = arith.divf %75, %76 : vector<8x128xf32>
    %78 = vector.extract_strided_slice %58 {offsets = [0, 256], sizes = [8, 128], strides = [1, 1]} : vector<8x384xf32> to vector<8x128xf32>
    %79 = vector.extract_strided_slice %61 {offsets = [0, 256], sizes = [8, 128], strides = [1, 1]} : vector<8x384xf32> to vector<8x128xf32>
    %80 = arith.mulf %69, %79 : vector<8x128xf32>
    %81 = arith.addf %78, %80 : vector<8x128xf32>
    %82 = math.tanh %81 : vector<8x128xf32>
    %cst_31 = arith.constant 1.000000e+00 : f32
    %83 = vector.broadcast %cst_31 : f32 to vector<8x128xf32>
    %84 = arith.subf %83, %77 : vector<8x128xf32>
    %85 = arith.mulf %84, %82 : vector<8x128xf32>
    %86 = arith.mulf %77, %52 : vector<8x128xf32>
    %87 = arith.addf %85, %86 : vector<8x128xf32>
    %88 = arith.index_cast %56 : i32 to index
    %c0_32 = arith.constant 0 : index
    %89 = vector.load %arg13[%88, %c0_32] : memref<48x128xf32, #tpu.memory_space<vmem>>, vector<8x128xf32>
    tpu.vector_store %arg13[%88, %c0_32], %87 {strides = array<i32>} : memref<48x128xf32, #tpu.memory_space<vmem>>, vector<8x128xf32>,
    %c2_i32 = arith.constant 2 : i32
    %c8_i32_33 = arith.constant 8 : i32
    %90 = arith.muli %c2_i32, %c8_i32_33 : i32
    %91 = tpu.assume_multiple %90, 8 : i32
    %92 = arith.index_cast %91 : i32 to index
    %c0_34 = arith.constant 0 : index
    %93 = vector.load %arg12[%92, %c0_34] : memref<48x384xf32, #tpu.memory_space<vmem>>, vector<8x384xf32>
    %94 = arith.truncf %87 : vector<8x128xf32> to vector<8x128xbf16>
    %cst_35 = arith.constant dense<0.000000e+00> : vector<8x384xf32>
    %95 = tpu.matmul %94, %16, %cst_35 {dimension_numbers = #tpu.dot_dimension_numbers<[1], [0], [0], [1], [0, 0, 1, 1], [], []>} : vector<8x128xbf16>, vector<128x384xbf16>, vector<8x384xf32> -> vector<8x384xf32>
    %96 = arith.addf %95, %19 : vector<8x384xf32>
    %97 = vector.extract_strided_slice %93 {offsets = [0, 0], sizes = [8, 128], strides = [1, 1]} : vector<8x384xf32> to vector<8x128xf32>
    %98 = vector.extract_strided_slice %96 {offsets = [0, 0], sizes = [8, 128], strides = [1, 1]} : vector<8x384xf32> to vector<8x128xf32>
    %99 = arith.addf %97, %98 : vector<8x128xf32>
    %100 = arith.negf %99 : vector<8x128xf32>
    %101 = math.exp %100 : vector<8x128xf32>
    %cst_36 = arith.constant 1.000000e+00 : f32
    %102 = vector.broadcast %cst_36 : f32 to vector<8x128xf32>
    %103 = arith.addf %102, %101 : vector<8x128xf32>
    %104 = arith.divf %102, %103 : vector<8x128xf32>
    %105 = vector.extract_strided_slice %93 {offsets = [0, 128], sizes = [8, 128], strides = [1, 1]} : vector<8x384xf32> to vector<8x128xf32>
    %106 = vector.extract_strided_slice %96 {offsets = [0, 128], sizes = [8, 128], strides = [1, 1]} : vector<8x384xf32> to vector<8x128xf32>
    %107 = arith.addf %105, %106 : vector<8x128xf32>
    %108 = arith.negf %107 : vector<8x128xf32>
    %109 = math.exp %108 : vector<8x128xf32>
    %cst_37 = arith.constant 1.000000e+00 : f32
    %110 = vector.broadcast %cst_37 : f32 to vector<8x128xf32>
    %111 = arith.addf %110, %109 : vector<8x128xf32>
    %112 = arith.divf %110, %111 : vector<8x128xf32>
    %113 = vector.extract_strided_slice %93 {offsets = [0, 256], sizes = [8, 128], strides = [1, 1]} : vector<8x384xf32> to vector<8x128xf32>
    %114 = vector.extract_strided_slice %96 {offsets = [0, 256], sizes = [8, 128], strides = [1, 1]} : vector<8x384xf32> to vector<8x128xf32>
    %115 = arith.mulf %104, %114 : vector<8x128xf32>
    %116 = arith.addf %113, %115 : vector<8x128xf32>
    %117 = math.tanh %116 : vector<8x128xf32>
    %cst_38 = arith.constant 1.000000e+00 : f32
    %118 = vector.broadcast %cst_38 : f32 to vector<8x128xf32>
    %119 = arith.subf %118, %112 : vector<8x128xf32>
    %120 = arith.mulf %119, %117 : vector<8x128xf32>
    %121 = arith.mulf %112, %87 : vector<8x128xf32>
    %122 = arith.addf %120, %121 : vector<8x128xf32>
    %123 = arith.index_cast %91 : i32 to index
    %c0_39 = arith.constant 0 : index
    %124 = vector.load %arg13[%123, %c0_39] : memref<48x128xf32, #tpu.memory_space<vmem>>, vector<8x128xf32>
    tpu.vector_store %arg13[%123, %c0_39], %122 {strides = array<i32>} : memref<48x128xf32, #tpu.memory_space<vmem>>, vector<8x128xf32>,
    %c3_i32 = arith.constant 3 : i32
    %c8_i32_40 = arith.constant 8 : i32
    %125 = arith.muli %c3_i32, %c8_i32_40 : i32
    %126 = tpu.assume_multiple %125, 8 : i32
    %127 = arith.index_cast %126 : i32 to index
    %c0_41 = arith.constant 0 : index
    %128 = vector.load %arg12[%127, %c0_41] : memref<48x384xf32, #tpu.memory_space<vmem>>, vector<8x384xf32>
    %129 = arith.truncf %122 : vector<8x128xf32> to vector<8x128xbf16>
    %cst_42 = arith.constant dense<0.000000e+00> : vector<8x384xf32>
    %130 = tpu.matmul %129, %16, %cst_42 {dimension_numbers = #tpu.dot_dimension_numbers<[1], [0], [0], [1], [0, 0, 1, 1], [], []>} : vector<8x128xbf16>, vector<128x384xbf16>, vector<8x384xf32> -> vector<8x384xf32>
    %131 = arith.addf %130, %19 : vector<8x384xf32>
    %132 = vector.extract_strided_slice %128 {offsets = [0, 0], sizes = [8, 128], strides = [1, 1]} : vector<8x384xf32> to vector<8x128xf32>
    %133 = vector.extract_strided_slice %131 {offsets = [0, 0], sizes = [8, 128], strides = [1, 1]} : vector<8x384xf32> to vector<8x128xf32>
    %134 = arith.addf %132, %133 : vector<8x128xf32>
    %135 = arith.negf %134 : vector<8x128xf32>
    %136 = math.exp %135 : vector<8x128xf32>
    %cst_43 = arith.constant 1.000000e+00 : f32
    %137 = vector.broadcast %cst_43 : f32 to vector<8x128xf32>
    %138 = arith.addf %137, %136 : vector<8x128xf32>
    %139 = arith.divf %137, %138 : vector<8x128xf32>
    %140 = vector.extract_strided_slice %128 {offsets = [0, 128], sizes = [8, 128], strides = [1, 1]} : vector<8x384xf32> to vector<8x128xf32>
    %141 = vector.extract_strided_slice %131 {offsets = [0, 128], sizes = [8, 128], strides = [1, 1]} : vector<8x384xf32> to vector<8x128xf32>
    %142 = arith.addf %140, %141 : vector<8x128xf32>
    %143 = arith.negf %142 : vector<8x128xf32>
    %144 = math.exp %143 : vector<8x128xf32>
    %cst_44 = arith.constant 1.000000e+00 : f32
    %145 = vector.broadcast %cst_44 : f32 to vector<8x128xf32>
    %146 = arith.addf %145, %144 : vector<8x128xf32>
    %147 = arith.divf %145, %146 : vector<8x128xf32>
    %148 = vector.extract_strided_slice %128 {offsets = [0, 256], sizes = [8, 128], strides = [1, 1]} : vector<8x384xf32> to vector<8x128xf32>
    %149 = vector.extract_strided_slice %131 {offsets = [0, 256], sizes = [8, 128], strides = [1, 1]} : vector<8x384xf32> to vector<8x128xf32>
    %150 = arith.mulf %139, %149 : vector<8x128xf32>
    %151 = arith.addf %148, %150 : vector<8x128xf32>
    %152 = math.tanh %151 : vector<8x128xf32>
    %cst_45 = arith.constant 1.000000e+00 : f32
    %153 = vector.broadcast %cst_45 : f32 to vector<8x128xf32>
    %154 = arith.subf %153, %147 : vector<8x128xf32>
    %155 = arith.mulf %154, %152 : vector<8x128xf32>
    %156 = arith.mulf %147, %122 : vector<8x128xf32>
    %157 = arith.addf %155, %156 : vector<8x128xf32>
    %158 = arith.index_cast %126 : i32 to index
    %c0_46 = arith.constant 0 : index
    %159 = vector.load %arg13[%158, %c0_46] : memref<48x128xf32, #tpu.memory_space<vmem>>, vector<8x128xf32>
    tpu.vector_store %arg13[%158, %c0_46], %157 {strides = array<i32>} : memref<48x128xf32, #tpu.memory_space<vmem>>, vector<8x128xf32>,
    %c4_i32 = arith.constant 4 : i32
    %c8_i32_47 = arith.constant 8 : i32
    %160 = arith.muli %c4_i32, %c8_i32_47 : i32
    %161 = tpu.assume_multiple %160, 8 : i32
    %162 = arith.index_cast %161 : i32 to index
    %c0_48 = arith.constant 0 : index
    %163 = vector.load %arg12[%162, %c0_48] : memref<48x384xf32, #tpu.memory_space<vmem>>, vector<8x384xf32>
    %164 = arith.truncf %157 : vector<8x128xf32> to vector<8x128xbf16>
    %cst_49 = arith.constant dense<0.000000e+00> : vector<8x384xf32>
    %165 = tpu.matmul %164, %16, %cst_49 {dimension_numbers = #tpu.dot_dimension_numbers<[1], [0], [0], [1], [0, 0, 1, 1], [], []>} : vector<8x128xbf16>, vector<128x384xbf16>, vector<8x384xf32> -> vector<8x384xf32>
    %166 = arith.addf %165, %19 : vector<8x384xf32>
    %167 = vector.extract_strided_slice %163 {offsets = [0, 0], sizes = [8, 128], strides = [1, 1]} : vector<8x384xf32> to vector<8x128xf32>
    %168 = vector.extract_strided_slice %166 {offsets = [0, 0], sizes = [8, 128], strides = [1, 1]} : vector<8x384xf32> to vector<8x128xf32>
    %169 = arith.addf %167, %168 : vector<8x128xf32>
    %170 = arith.negf %169 : vector<8x128xf32>
    %171 = math.exp %170 : vector<8x128xf32>
    %cst_50 = arith.constant 1.000000e+00 : f32
    %172 = vector.broadcast %cst_50 : f32 to vector<8x128xf32>
    %173 = arith.addf %172, %171 : vector<8x128xf32>
    %174 = arith.divf %172, %173 : vector<8x128xf32>
    %175 = vector.extract_strided_slice %163 {offsets = [0, 128], sizes = [8, 128], strides = [1, 1]} : vector<8x384xf32> to vector<8x128xf32>
    %176 = vector.extract_strided_slice %166 {offsets = [0, 128], sizes = [8, 128], strides = [1, 1]} : vector<8x384xf32> to vector<8x128xf32>
    %177 = arith.addf %175, %176 : vector<8x128xf32>
    %178 = arith.negf %177 : vector<8x128xf32>
    %179 = math.exp %178 : vector<8x128xf32>
    %cst_51 = arith.constant 1.000000e+00 : f32
    %180 = vector.broadcast %cst_51 : f32 to vector<8x128xf32>
    %181 = arith.addf %180, %179 : vector<8x128xf32>
    %182 = arith.divf %180, %181 : vector<8x128xf32>
    %183 = vector.extract_strided_slice %163 {offsets = [0, 256], sizes = [8, 128], strides = [1, 1]} : vector<8x384xf32> to vector<8x128xf32>
    %184 = vector.extract_strided_slice %166 {offsets = [0, 256], sizes = [8, 128], strides = [1, 1]} : vector<8x384xf32> to vector<8x128xf32>
    %185 = arith.mulf %174, %184 : vector<8x128xf32>
    %186 = arith.addf %183, %185 : vector<8x128xf32>
    %187 = math.tanh %186 : vector<8x128xf32>
    %cst_52 = arith.constant 1.000000e+00 : f32
    %188 = vector.broadcast %cst_52 : f32 to vector<8x128xf32>
    %189 = arith.subf %188, %182 : vector<8x128xf32>
    %190 = arith.mulf %189, %187 : vector<8x128xf32>
    %191 = arith.mulf %182, %157 : vector<8x128xf32>
    %192 = arith.addf %190, %191 : vector<8x128xf32>
    %193 = arith.index_cast %161 : i32 to index
    %c0_53 = arith.constant 0 : index
    %194 = vector.load %arg13[%193, %c0_53] : memref<48x128xf32, #tpu.memory_space<vmem>>, vector<8x128xf32>
    tpu.vector_store %arg13[%193, %c0_53], %192 {strides = array<i32>} : memref<48x128xf32, #tpu.memory_space<vmem>>, vector<8x128xf32>,
    %c5_i32 = arith.constant 5 : i32
    %c8_i32_54 = arith.constant 8 : i32
    %195 = arith.muli %c5_i32, %c8_i32_54 : i32
    %196 = tpu.assume_multiple %195, 8 : i32
    %197 = arith.index_cast %196 : i32 to index
    %c0_55 = arith.constant 0 : index
    %198 = vector.load %arg12[%197, %c0_55] : memref<48x384xf32, #tpu.memory_space<vmem>>, vector<8x384xf32>
    %199 = arith.truncf %192 : vector<8x128xf32> to vector<8x128xbf16>
    %cst_56 = arith.constant dense<0.000000e+00> : vector<8x384xf32>
    %200 = tpu.matmul %199, %16, %cst_56 {dimension_numbers = #tpu.dot_dimension_numbers<[1], [0], [0], [1], [0, 0, 1, 1], [], []>} : vector<8x128xbf16>, vector<128x384xbf16>, vector<8x384xf32> -> vector<8x384xf32>
    %201 = arith.addf %200, %19 : vector<8x384xf32>
    %202 = vector.extract_strided_slice %198 {offsets = [0, 0], sizes = [8, 128], strides = [1, 1]} : vector<8x384xf32> to vector<8x128xf32>
    %203 = vector.extract_strided_slice %201 {offsets = [0, 0], sizes = [8, 128], strides = [1, 1]} : vector<8x384xf32> to vector<8x128xf32>
    %204 = arith.addf %202, %203 : vector<8x128xf32>
    %205 = arith.negf %204 : vector<8x128xf32>
    %206 = math.exp %205 : vector<8x128xf32>
    %cst_57 = arith.constant 1.000000e+00 : f32
    %207 = vector.broadcast %cst_57 : f32 to vector<8x128xf32>
    %208 = arith.addf %207, %206 : vector<8x128xf32>
    %209 = arith.divf %207, %208 : vector<8x128xf32>
    %210 = vector.extract_strided_slice %198 {offsets = [0, 128], sizes = [8, 128], strides = [1, 1]} : vector<8x384xf32> to vector<8x128xf32>
    %211 = vector.extract_strided_slice %201 {offsets = [0, 128], sizes = [8, 128], strides = [1, 1]} : vector<8x384xf32> to vector<8x128xf32>
    %212 = arith.addf %210, %211 : vector<8x128xf32>
    %213 = arith.negf %212 : vector<8x128xf32>
    %214 = math.exp %213 : vector<8x128xf32>
    %cst_58 = arith.constant 1.000000e+00 : f32
    %215 = vector.broadcast %cst_58 : f32 to vector<8x128xf32>
    %216 = arith.addf %215, %214 : vector<8x128xf32>
    %217 = arith.divf %215, %216 : vector<8x128xf32>
    %218 = vector.extract_strided_slice %198 {offsets = [0, 256], sizes = [8, 128], strides = [1, 1]} : vector<8x384xf32> to vector<8x128xf32>
    %219 = vector.extract_strided_slice %201 {offsets = [0, 256], sizes = [8, 128], strides = [1, 1]} : vector<8x384xf32> to vector<8x128xf32>
    %220 = arith.mulf %209, %219 : vector<8x128xf32>
    %221 = arith.addf %218, %220 : vector<8x128xf32>
    %222 = math.tanh %221 : vector<8x128xf32>
    %cst_59 = arith.constant 1.000000e+00 : f32
    %223 = vector.broadcast %cst_59 : f32 to vector<8x128xf32>
    %224 = arith.subf %223, %217 : vector<8x128xf32>
    %225 = arith.mulf %224, %222 : vector<8x128xf32>
    %226 = arith.mulf %217, %192 : vector<8x128xf32>
    %227 = arith.addf %225, %226 : vector<8x128xf32>
    %228 = arith.index_cast %196 : i32 to index
    %c0_60 = arith.constant 0 : index
    %229 = vector.load %arg13[%228, %c0_60] : memref<48x128xf32, #tpu.memory_space<vmem>>, vector<8x128xf32>
    tpu.vector_store %arg13[%228, %c0_60], %227 {strides = array<i32>} : memref<48x128xf32, #tpu.memory_space<vmem>>, vector<8x128xf32>,
    %c6_i32 = arith.constant 6 : i32
    %c0_61 = arith.constant 0 : index
    %c0_62 = arith.constant 0 : index
    %230 = vector.load %arg13[%c0_61, %c0_62] : memref<48x128xf32, #tpu.memory_space<vmem>>, vector<48x128xf32>
    %231 = vector.shape_cast %230 : vector<48x128xf32> to vector<6x8x128xf32>
    %c0_63 = arith.constant 0 : index
    %c0_64 = arith.constant 0 : index
    %c0_65 = arith.constant 0 : index
    %232 = vector.load %arg10[%c0_63, %c0_64, %c0_65] : memref<6x8x128xf32, #tpu.memory_space<vmem>>, vector<6x8x128xf32>
    tpu.vector_store %arg10[%c0_63, %c0_64, %c0_65], %231 {strides = array<i32>} : memref<6x8x128xf32, #tpu.memory_space<vmem>>, vector<6x8x128xf32>,
    %c0_66 = arith.constant 0 : index
    %c0_67 = arith.constant 0 : index
    %233 = vector.load %arg13[%c0_66, %c0_67] : memref<48x128xf32, #tpu.memory_space<vmem>>, vector<48x128xf32>
    %234 = arith.truncf %233 : vector<48x128xf32> to vector<48x128xbf16>
    %c0_68 = arith.constant 0 : index
    %c0_69 = arith.constant 0 : index
    %235 = vector.load %arg9[%c0_68, %c0_69] : memref<128x256xbf16, #tpu.memory_space<vmem>>, vector<128x256xbf16>
    %cst_70 = arith.constant dense<0.000000e+00> : vector<48x256xf32>
    %236 = tpu.matmul %234, %235, %cst_70 {dimension_numbers = #tpu.dot_dimension_numbers<[1], [0], [0], [1], [0, 0, 1, 1], [], []>} : vector<48x128xbf16>, vector<128x256xbf16>, vector<48x256xf32> -> vector<48x256xf32>
    %237 = vector.shape_cast %236 : vector<48x256xf32> to vector<6x8x256xf32>
    %c0_71 = arith.constant 0 : index
    %c0_72 = arith.constant 0 : index
    %c0_73 = arith.constant 0 : index
    %238 = vector.load %arg11[%c0_71, %c0_72, %c0_73] : memref<6x8x256xf32, #tpu.memory_space<vmem>>, vector<6x8x256xf32>
    tpu.vector_store %arg11[%c0_71, %c0_72, %c0_73], %237 {strides = array<i32>} : memref<6x8x256xf32, #tpu.memory_space<vmem>>, vector<6x8x256xf32>,
    return
  }
  func.func @transform_0(%arg0: i32) -> (i32, i32) {
    %c0_i32 = arith.constant 0 : i32
    %c0_i32_0 = arith.constant 0 : i32
    return %arg0, %c0_i32 : i32, i32
  }
  func.func @transform_1(%arg0: i32) -> (i32, i32) {
    %c0_i32 = arith.constant 0 : i32
    %c0_i32_0 = arith.constant 0 : i32
    %c0_i32_1 = arith.constant 0 : i32
    return %c0_i32, %c0_i32_0 : i32, i32
  }
  func.func @transform_2(%arg0: i32) -> (i32, i32) {
    %c0_i32 = arith.constant 0 : i32
    %c0_i32_0 = arith.constant 0 : i32
    %c0_i32_1 = arith.constant 0 : i32
    return %c0_i32, %c0_i32_0 : i32, i32
  }
  func.func @transform_3(%arg0: i32) -> (i32, i32, i32) {
    %c0_i32 = arith.constant 0 : i32
    %c0_i32_0 = arith.constant 0 : i32
    %c0_i32_1 = arith.constant 0 : i32
    return %c0_i32, %arg0, %c0_i32_0 : i32, i32, i32
  }
  func.func @transform_4(%arg0: i32) -> (i32, i32) {
    %c0_i32 = arith.constant 0 : i32
    %c0_i32_0 = arith.constant 0 : i32
    %c0_i32_1 = arith.constant 0 : i32
    return %c0_i32, %c0_i32_0 : i32, i32
  }
  func.func @transform_5(%arg0: i32) -> (i32, i32) {
    %c0_i32 = arith.constant 0 : i32
    %c0_i32_0 = arith.constant 0 : i32
    %c0_i32_1 = arith.constant 0 : i32
    return %c0_i32, %c0_i32_0 : i32, i32
  }
  func.func @transform_6(%arg0: i32) -> (i32, i32) {
    %c0_i32 = arith.constant 0 : i32
    %c0_i32_0 = arith.constant 0 : i32
    %c0_i32_1 = arith.constant 0 : i32
    return %c0_i32, %c0_i32_0 : i32, i32
  }
  func.func @transform_7(%arg0: i32) -> (i32, i32) {
    %c0_i32 = arith.constant 0 : i32
    %c0_i32_0 = arith.constant 0 : i32
    %c0_i32_1 = arith.constant 0 : i32
    return %c0_i32, %c0_i32_0 : i32, i32
  }
  func.func @transform_8(%arg0: i32) -> (i32, i32) {
    %c0_i32 = arith.constant 0 : i32
    %c0_i32_0 = arith.constant 0 : i32
    %c0_i32_1 = arith.constant 0 : i32
    return %c0_i32, %c0_i32_0 : i32, i32
  }
  func.func @transform_9(%arg0: i32) -> (i32, i32, i32) {
    %c0_i32 = arith.constant 0 : i32
    %c0_i32_0 = arith.constant 0 : i32
    %c0_i32_1 = arith.constant 0 : i32
    return %c0_i32, %arg0, %c0_i32_0 : i32, i32, i32
  }
  func.func @transform_10(%arg0: i32) -> (i32, i32, i32) {
    %c0_i32 = arith.constant 0 : i32
    %c0_i32_0 = arith.constant 0 : i32
    %c0_i32_1 = arith.constant 0 : i32
    return %c0_i32, %arg0, %c0_i32_0 : i32, i32, i32
  }
}

</mosaic_0001>

<llo_original>
// kernel: tpu_custom_call.1
$region0: #{tpu_custom_call.1}
  #allocation0 [shape = 'u32[]', space=smem, size = 0x4, offset = 0x4, fixed_abs, tag = 'smem constant byte address 0x4 - core index']
  #allocation1 [shape = 'u32[72,128]{1,0:T(1,128)}', space=vmem, size = 0x9000, scoped, tag = 'internal scratch']
  #allocation2 [shape = 'f32[48,384]{1,0:T(8,128)}', space=vmem, size = 0x12000, scoped, tag = 'scratch operand']
  #allocation3 [shape = 'f32[48,128]{1,0:T(8,128)}', space=vmem, size = 0x6000, scoped, tag = 'scratch operand']
  %s0 = inlined_call_operand.hbm [shape: bf16[8,256], index: 0, kind: input, shape index: {}]
  %s1 = inlined_call_operand.hbm [shape: bf16[256,128], index: 1, kind: input, shape index: {}]
  %s2 = inlined_call_operand.hbm [shape: f32[1,128], index: 2, kind: input, shape index: {}]
  %s3 = inlined_call_operand.hbm [shape: bf16[6,8,128], index: 3, kind: input, shape index: {}]
  %s4 = inlined_call_operand.hbm [shape: bf16[128,384], index: 4, kind: input, shape index: {}]
  %s5 = inlined_call_operand.vmem [shape: f32[1,384], index: 5, kind: input, shape index: {}]
  %s6 = inlined_call_operand.hbm [shape: bf16[128,384], index: 6, kind: input, shape index: {}]
  %s7 = inlined_call_operand.vmem [shape: f32[1,384], index: 7, kind: input, shape index: {}]
  %s8 = inlined_call_operand.hbm [shape: bf16[128,256], index: 8, kind: input, shape index: {}]
  %s9 = inlined_call_operand.hbm [shape: f32[6,8,128], index: 9, kind: output, shape index: {0}]
  %s10 = inlined_call_operand.hbm [shape: f32[6,8,256], index: 10, kind: output, shape index: {1}]
  %11 = xla_tuple %s9, %s10
  %s12 = sld [smem:[#allocation0]]
  $region82: #{tpu_custom_call.1} parent=0
    _
  %s14 = ssub.s32 1, %s12
  %s15 = scalar_select 0, %s14, %s12
  $region1: #{tpu_custom_call.1} parent=0
    #allocation4 [shape = 'u8[4096]{0}', space=vmem, size = 0x1000, scoped, tag = 'input window, operand 0, single buffered']
    #allocation5 [shape = 's32[1]{0}', space=sflag, size = 0x4, scoped, tag = 'scoped memory for tpu_custom_call.1']
    #allocation6 [shape = 's32[1]{0}', space=sflag, size = 0x4, scoped, tag = 'scoped memory for tpu_custom_call.1']
    #allocation7 [shape = 'u8[65536]{0}', space=vmem, size = 0x10000, scoped, tag = 'input window, operand 1, single buffered']
    #allocation8 [shape = 's32[1]{0}', space=sflag, size = 0x4, scoped, tag = 'scoped memory for tpu_custom_call.1']
    #allocation9 [shape = 'u8[512]{0}', space=vmem, size = 0x400, scoped, tag = 'input window, operand 2, single buffered']
    #allocation10 [shape = 'u8[12288]{0}', space=vmem, size = 0x3000, scoped, tag = 'input window, operand 3, single buffered']
    #allocation11 [shape = 's32[1]{0}', space=sflag, size = 0x4, scoped, tag = 'scoped memory for tpu_custom_call.1']
    #allocation12 [shape = 'u8[98304]{0}', space=vmem, size = 0x18000, scoped, tag = 'input window, operand 4, single buffered']
    #allocation13 [shape = 'u8[98304]{0}', space=vmem, size = 0x18000, scoped, tag = 'input window, operand 6, single buffered']
    #allocation14 [shape = 's32[1]{0}', space=sflag, size = 0x4, scoped, tag = 'scoped memory for tpu_custom_call.1']
    #allocation15 [shape = 'u8[65536]{0}', space=vmem, size = 0x10000, scoped, tag = 'input window, operand 8, single buffered']
    #allocation16 [shape = 'u8[24576]{0}', space=vmem, size = 0x6000, scoped, tag = 'output window, operand 0, single buffered']
    #allocation17 [shape = 'u8[49152]{0}', space=vmem, size = 0xc000, scoped, tag = 'output window, operand 1, single buffered']
    #allocation18 [shape = 's32[1]{0}', space=sflag, size = 0x4, scoped, tag = 'scoped memory for tpu_custom_call.1']
    %16 = vsyncpa [#allocation5], 0
    %17 = vsyncpa [#allocation8], 0
    %18 = vsyncpa [#allocation11], 0
    %19 = vsyncpa [#allocation14], 0
    %20 = vsyncpa [#allocation6], 0
    %21 = vsyncpa [#allocation18], 0
    // Predicated region
    $region2: #{tpu_custom_call.1} parent=1 // pred_check
      _
    $region3: #{tpu_custom_call.1} parent=1 // pred_check_branch
      %23 = sbr.rel (0) target = $region5
    $region4: #{tpu_custom_call.1} parent=1 // pred_region
      %25 = vsyncadd [#allocation5], 0
      %s27 = sshll.u32 %s0, 4
      %s28 = int_to_ptr.hbm [resolvable:$true] %s27
      %s29 = sshll.u32 [#allocation4], 4
      %s30 = int_to_ptr.vmem [resolvable:$true] %s29
      %32 = dma.hbm_to_vmem [thread:$0]  %s28, 128, %s30, [#allocation5]
    $region5: #{tpu_custom_call.1} parent=1 // pred_fallthru
      _
    // Predicated region
    $region6: #{tpu_custom_call.1} parent=1 // pred_check
      _
    $region7: #{tpu_custom_call.1} parent=1 // pred_check_branch
      %34 = sbr.rel (0) target = $region9
    $region8: #{tpu_custom_call.1} parent=1 // pred_region
      %36 = vsyncadd [#allocation8], 0
      %s37 = sshll.u32 %s1, 4
      %s38 = int_to_ptr.hbm [resolvable:$true] %s37
      %s39 = sshll.u32 [#allocation7], 4
      %s40 = int_to_ptr.vmem [resolvable:$true] %s39
      %45 = dma.hbm_to_vmem [thread:$0]  %s38, 2048, %s40, [#allocation8], 64, 64, 4
    $region9: #{tpu_custom_call.1} parent=1 // pred_fallthru
      _
    // Predicated region
    $region10: #{tpu_custom_call.1} parent=1 // pred_check
      _
    $region11: #{tpu_custom_call.1} parent=1 // pred_check_branch
      %47 = sbr.rel (0) target = $region13
    $region12: #{tpu_custom_call.1} parent=1 // pred_region
      %49 = vsyncadd [#allocation8], 0
      %s51 = sshll.u32 %s2, 4
      %s52 = int_to_ptr.hbm [resolvable:$true] %s51
      %s53 = sshll.u32 [#allocation9], 4
      %s54 = int_to_ptr.vmem [resolvable:$true] %s53
      %56 = dma.hbm_to_vmem [thread:$0]  %s52, 16, %s54, [#allocation8]
    $region13: #{tpu_custom_call.1} parent=1 // pred_fallthru
      _
    // Predicated region
    $region14: #{tpu_custom_call.1} parent=1 // pred_check
      _
    $region15: #{tpu_custom_call.1} parent=1 // pred_check_branch
      %58 = sbr.rel (0) target = $region17
    $region16: #{tpu_custom_call.1} parent=1 // pred_region
      %60 = vsyncadd [#allocation11], 0
      %s61 = sshll.u32 %s3, 4
      %s62 = int_to_ptr.hbm [resolvable:$true] %s61
      %s63 = sshll.u32 [#allocation10], 4
      %s64 = int_to_ptr.vmem [resolvable:$true] %s63
      %69 = dma.hbm_to_vmem [thread:$0]  %s62, 384, %s64, [#allocation11], 64, 64, 4
    $region17: #{tpu_custom_call.1} parent=1 // pred_fallthru
      _
    // Predicated region
    $region18: #{tpu_custom_call.1} parent=1 // pred_check
      _
    $region19: #{tpu_custom_call.1} parent=1 // pred_check_branch
      %71 = sbr.rel (0) target = $region21
    $region20: #{tpu_custom_call.1} parent=1 // pred_region
      %73 = vsyncadd [#allocation11], 0
      %s74 = sshll.u32 %s4, 4
      %s75 = int_to_ptr.hbm [resolvable:$true] %s74
      %s76 = sshll.u32 [#allocation12], 4
      %s77 = int_to_ptr.vmem [resolvable:$true] %s76
      %82 = dma.hbm_to_vmem [thread:$0]  %s75, 3072, %s77, [#allocation11], 192, 192, 12
    $region21: #{tpu_custom_call.1} parent=1 // pred_fallthru
      _
    // Predicated region
    $region22: #{tpu_custom_call.1} parent=1 // pred_check
      _
    $region23: #{tpu_custom_call.1} parent=1 // pred_check_branch
      %84 = sbr.rel (0) target = $region25
    $region24: #{tpu_custom_call.1} parent=1 // pred_region
      _
    $region25: #{tpu_custom_call.1} parent=1 // pred_fallthru
      _
    // Predicated region
    $region26: #{tpu_custom_call.1} parent=1 // pred_check
      _
    $region27: #{tpu_custom_call.1} parent=1 // pred_check_branch
      %86 = sbr.rel (0) target = $region29
    $region28: #{tpu_custom_call.1} parent=1 // pred_region
      %88 = vsyncadd [#allocation14], 0
      %s89 = sshll.u32 %s6, 4
      %s90 = int_to_ptr.hbm [resolvable:$true] %s89
      %s91 = sshll.u32 [#allocation13], 4
      %s92 = int_to_ptr.vmem [resolvable:$true] %s91
      %97 = dma.hbm_to_vmem [thread:$0]  %s90, 3072, %s92, [#allocation14], 192, 192, 12
    $region29: #{tpu_custom_call.1} parent=1 // pred_fallthru
      _
    // Predicated region
    $region30: #{tpu_custom_call.1} parent=1 // pred_check
      _
    $region31: #{tpu_custom_call.1} parent=1 // pred_check_branch
      %99 = sbr.rel (0) target = $region33
    $region32: #{tpu_custom_call.1} parent=1 // pred_region
      _
    $region33: #{tpu_custom_call.1} parent=1 // pred_fallthru
      _
    // Predicated region
    $region34: #{tpu_custom_call.1} parent=1 // pred_check
      _
    $region35: #{tpu_custom_call.1} parent=1 // pred_check_branch
      %101 = sbr.rel (0) target = $region37
    $region36: #{tpu_custom_call.1} parent=1 // pred_region
      %103 = vsyncadd [#allocation14], 0
      %s104 = sshll.u32 %s8, 4
      %s105 = int_to_ptr.hbm [resolvable:$true] %s104
      %s106 = sshll.u32 [#allocation15], 4
      %s107 = int_to_ptr.vmem [resolvable:$true] %s106
      %112 = dma.hbm_to_vmem [thread:$0]  %s105, 2048, %s107, [#allocation14], 128, 128, 8
    $region37: #{tpu_custom_call.1} parent=1 // pred_fallthru
      _
    // Predicated region
    $region38: #{tpu_custom_call.1} parent=1 // pred_check
      _
    $region39: #{tpu_custom_call.1} parent=1 // pred_check_branch
      %114 = sbr.rel (0) target = $region41
    $region40: #{tpu_custom_call.1} parent=1 // pred_region
      %116 = dma.done [#allocation5], 128
    $region41: #{tpu_custom_call.1} parent=1 // pred_fallthru
      _
    // Predicated region
    $region42: #{tpu_custom_call.1} parent=1 // pred_check
      _
    $region43: #{tpu_custom_call.1} parent=1 // pred_check_branch
      %118 = sbr.rel (0) target = $region45
    $region44: #{tpu_custom_call.1} parent=1 // pred_region
      %120 = dma.done [#allocation8], 2048
    $region45: #{tpu_custom_call.1} parent=1 // pred_fallthru
      _
    // Predicated region
    $region46: #{tpu_custom_call.1} parent=1 // pred_check
      _
    $region47: #{tpu_custom_call.1} parent=1 // pred_check_branch
      %122 = sbr.rel (0) target = $region49
    $region48: #{tpu_custom_call.1} parent=1 // pred_region
      %124 = dma.done [#allocation8], 16
    $region49: #{tpu_custom_call.1} parent=1 // pred_fallthru
      _
    // Predicated region
    $region50: #{tpu_custom_call.1} parent=1 // pred_check
      _
    $region51: #{tpu_custom_call.1} parent=1 // pred_check_branch
      %126 = sbr.rel (0) target = $region53
    $region52: #{tpu_custom_call.1} parent=1 // pred_region
      %128 = dma.done [#allocation11], 384
    $region53: #{tpu_custom_call.1} parent=1 // pred_fallthru
      _
    // Predicated region
    $region54: #{tpu_custom_call.1} parent=1 // pred_check
      _
    $region55: #{tpu_custom_call.1} parent=1 // pred_check_branch
      %130 = sbr.rel (0) target = $region57
    $region56: #{tpu_custom_call.1} parent=1 // pred_region
      %132 = dma.done [#allocation11], 3072
    $region57: #{tpu_custom_call.1} parent=1 // pred_fallthru
      _
    // Predicated region
    $region58: #{tpu_custom_call.1} parent=1 // pred_check
      _
    $region59: #{tpu_custom_call.1} parent=1 // pred_check_branch
      %134 = sbr.rel (0) target = $region61
    $region60: #{tpu_custom_call.1} parent=1 // pred_region
      %136 = dma.done [#allocation14], 3072
    $region61: #{tpu_custom_call.1} parent=1 // pred_fallthru
      _
    // Predicated region
    $region62: #{tpu_custom_call.1} parent=1 // pred_check
      _
    $region63: #{tpu_custom_call.1} parent=1 // pred_check_branch
      %138 = sbr.rel (0) target = $region65
    $region64: #{tpu_custom_call.1} parent=1 // pred_region
      %140 = dma.done [#allocation14], 2048
    $region65: #{tpu_custom_call.1} parent=1 // pred_fallthru
      _
    %v141 = vld [vmem:[#allocation4] sm:$0xff]
    %v142 = vld [vmem:[#allocation7] sm:$0xf]
    %v143 = vld [vmem:[#allocation7 + $0x4] sm:$0xf]
    %v144 = vld [vmem:[#allocation7 + $0x8] sm:$0xf]
    %v145 = vld [vmem:[#allocation7 + $0xc] sm:$0xf]
    %v146 = vld [vmem:[#allocation7 + $0x10] sm:$0xf]
    %v147 = vld [vmem:[#allocation7 + $0x14] sm:$0xf]
    %v148 = vld [vmem:[#allocation7 + $0x18] sm:$0xf]
    %v149 = vld [vmem:[#allocation7 + $0x1c] sm:$0xf]
    %v150 = vld [vmem:[#allocation7 + $0x20] sm:$0xf]
    %v151 = vld [vmem:[#allocation7 + $0x24] sm:$0xf]
    %v152 = vld [vmem:[#allocation7 + $0x28] sm:$0xf]
    %v153 = vld [vmem:[#allocation7 + $0x2c] sm:$0xf]
    %v154 = vld [vmem:[#allocation7 + $0x30] sm:$0xf]
    %v155 = vld [vmem:[#allocation7 + $0x34] sm:$0xf]
    %v156 = vld [vmem:[#allocation7 + $0x38] sm:$0xf]
    %v157 = vld [vmem:[#allocation7 + $0x3c] sm:$0xf]
    %v158 = vld [vmem:[#allocation7 + $0x40] sm:$0xf]
    %v159 = vld [vmem:[#allocation7 + $0x44] sm:$0xf]
    %v160 = vld [vmem:[#allocation7 + $0x48] sm:$0xf]
    %v161 = vld [vmem:[#allocation7 + $0x4c] sm:$0xf]
    %v162 = vld [vmem:[#allocation7 + $0x50] sm:$0xf]
    %v163 = vld [vmem:[#allocation7 + $0x54] sm:$0xf]
    %v164 = vld [vmem:[#allocation7 + $0x58] sm:$0xf]
    %v165 = vld [vmem:[#allocation7 + $0x5c] sm:$0xf]
    %v166 = vld [vmem:[#allocation7 + $0x60] sm:$0xf]
    %v167 = vld [vmem:[#allocation7 + $0x64] sm:$0xf]
    %v168 = vld [vmem:[#allocation7 + $0x68] sm:$0xf]
    %v169 = vld [vmem:[#allocation7 + $0x6c] sm:$0xf]
    %v170 = vld [vmem:[#allocation7 + $0x70] sm:$0xf]
    %v171 = vld [vmem:[#allocation7 + $0x74] sm:$0xf]
    %v172 = vld [vmem:[#allocation7 + $0x78] sm:$0xf]
    %v173 = vld [vmem:[#allocation7 + $0x7c] sm:$0xf]
    %v174 = vld [vmem:[#allocation9] sm:$0x1]
    %v176 = vperm.slane %v174, 0
    %v179 = vunpack.c.l.b16 %v141
    %v180 = vunpack.c.h.b16 %v141
    %v181 = vpack.c.b16 %v179, %v179
    %v182 = vpack.c.b16 %v180, %v180
    %v217 = vunpack.c.l.b16 %v142
    %v218 = vunpack.c.l.b16 %v143
    %v219 = vunpack.c.l.b16 %v144
    %v220 = vunpack.c.l.b16 %v145
    %v221 = vunpack.c.l.b16 %v146
    %v222 = vunpack.c.l.b16 %v147
    %v223 = vunpack.c.l.b16 %v148
    %v224 = vunpack.c.l.b16 %v149
    %v225 = vunpack.c.l.b16 %v150
    %v226 = vunpack.c.l.b16 %v151
    %v227 = vunpack.c.l.b16 %v152
    %v228 = vunpack.c.l.b16 %v153
    %v229 = vunpack.c.l.b16 %v154
    %v230 = vunpack.c.l.b16 %v155
    %v231 = vunpack.c.l.b16 %v156
    %v232 = vunpack.c.l.b16 %v157
    %v233 = vunpack.c.l.b16 %v158
    %v234 = vunpack.c.l.b16 %v159
    %v235 = vunpack.c.l.b16 %v160
    %v236 = vunpack.c.l.b16 %v161
    %v237 = vunpack.c.l.b16 %v162
    %v238 = vunpack.c.l.b16 %v163
    %v239 = vunpack.c.l.b16 %v164
    %v240 = vunpack.c.l.b16 %v165
    %v241 = vunpack.c.l.b16 %v166
    %v242 = vunpack.c.l.b16 %v167
    %v243 = vunpack.c.l.b16 %v168
    %v244 = vunpack.c.l.b16 %v169
    %v245 = vunpack.c.l.b16 %v170
    %v246 = vunpack.c.l.b16 %v171
    %v247 = vunpack.c.l.b16 %v172
    %v248 = vunpack.c.l.b16 %v173
    %v249 = vpack.c.b16 %v218, %v217
    %v250 = vpack.c.b16 %v220, %v219
    %v251 = vpack.c.b16 %v222, %v221
    %v252 = vpack.c.b16 %v224, %v223
    %v253 = vpack.c.b16 %v226, %v225
    %v254 = vpack.c.b16 %v228, %v227
    %v255 = vpack.c.b16 %v230, %v229
    %v256 = vpack.c.b16 %v232, %v231
    %v257 = vpack.c.b16 %v234, %v233
    %v258 = vpack.c.b16 %v236, %v235
    %v259 = vpack.c.b16 %v238, %v237
    %v260 = vpack.c.b16 %v240, %v239
    %v261 = vpack.c.b16 %v242, %v241
    %v262 = vpack.c.b16 %v244, %v243
    %v263 = vpack.c.b16 %v246, %v245
    %v264 = vpack.c.b16 %v248, %v247
    %281 = vmatpush.bf16.msra.mxu0 %v256
    %282 = vmatpush.bf16.msra.mxu0 %v255
    %283 = vmatpush.bf16.msra.mxu0 %v254
    %284 = vmatpush.bf16.msra.mxu0 %v253
    %285 = vmatpush.bf16.msra.mxu0 %v252
    %286 = vmatpush.bf16.msra.mxu0 %v251
    %287 = vmatpush.bf16.msra.mxu0 %v250
    %288 = vmatpush.bf16.msra.mxu0 %v249
    %289 = vmatmul.bf16.gmra.mxu0 %v181
    %v290 = vpop.f32.mrf.mxu0
    %v291 = vadd.f32 %v176, %v290
    %v292 = vpop.f32.mrf.mxu0
    %293 = vdwg.mxu0
    %294 = vmatpush.bf16.msra.mxu0 %v264
    %295 = vmatpush.bf16.msra.mxu0 %v263
    %296 = vmatpush.bf16.msra.mxu0 %v262
    %297 = vmatpush.bf16.msra.mxu0 %v261
    %298 = vmatpush.bf16.msra.mxu0 %v260
    %299 = vmatpush.bf16.msra.mxu0 %v259
    %300 = vmatpush.bf16.msra.mxu0 %v258
    %301 = vmatpush.bf16.msra.mxu0 %v257
    %302 = vmatmul.bf16.gmra.mxu0 %v182
    %v303 = vpop.f32.mrf.mxu0
    %v304 = vadd.f32 %v291, %v303
    %v305 = vpop.f32.mrf.mxu0
    %306 = vdwg.mxu0
    %v307 = vmax.f32 %v304, 0.0
    %v308 = vld [vmem:[#allocation10] sm:$0xf]
    %v309 = vld [vmem:[#allocation10 + $0x4] sm:$0xf]
    %v310 = vld [vmem:[#allocation10 + $0x8] sm:$0xf]
    %v311 = vld [vmem:[#allocation10 + $0xc] sm:$0xf]
    %v312 = vld [vmem:[#allocation10 + $0x10] sm:$0xf]
    %v313 = vld [vmem:[#allocation10 + $0x14] sm:$0xf]
    %v314 = vld [vmem:[#allocation12] sm:$0xff]
    %v315 = vld [vmem:[#allocation12 + $0x8] sm:$0xf]
    %v316 = vld [vmem:[#allocation12 + $0xc] sm:$0xff]
    %v317 = vld [vmem:[#allocation12 + $0x14] sm:$0xf]
    %v318 = vld [vmem:[#allocation12 + $0x18] sm:$0xff]
    %v319 = vld [vmem:[#allocation12 + $0x20] sm:$0xf]
    %v320 = vld [vmem:[#allocation12 + $0x24] sm:$0xff]
    %v321 = vld [vmem:[#allocation12 + $0x2c] sm:$0xf]
    %v322 = vld [vmem:[#allocation12 + $0x30] sm:$0xff]
    %v323 = vld [vmem:[#allocation12 + $0x38] sm:$0xf]
    %v324 = vld [vmem:[#allocation12 + $0x3c] sm:$0xff]
    %v325 = vld [vmem:[#allocation12 + $0x44] sm:$0xf]
    %v326 = vld [vmem:[#allocation12 + $0x48] sm:$0xff]
    %v327 = vld [vmem:[#allocation12 + $0x50] sm:$0xf]
    %v328 = vld [vmem:[#allocation12 + $0x54] sm:$0xff]
    %v329 = vld [vmem:[#allocation12 + $0x5c] sm:$0xf]
    %v330 = vld [vmem:[#allocation12 + $0x60] sm:$0xff]
    %v331 = vld [vmem:[#allocation12 + $0x68] sm:$0xf]
    %v332 = vld [vmem:[#allocation12 + $0x6c] sm:$0xff]
    %v333 = vld [vmem:[#allocation12 + $0x74] sm:$0xf]
    %v334 = vld [vmem:[#allocation12 + $0x78] sm:$0xff]
    %v335 = vld [vmem:[#allocation12 + $0x80] sm:$0xf]
    %v336 = vld [vmem:[#allocation12 + $0x84] sm:$0xff]
    %v337 = vld [vmem:[#allocation12 + $0x8c] sm:$0xf]
    %v338 = vld [vmem:[#allocation12 + $0x90] sm:$0xff]
    %v339 = vld [vmem:[#allocation12 + $0x98] sm:$0xf]
    %v340 = vld [vmem:[#allocation12 + $0x9c] sm:$0xff]
    %v341 = vld [vmem:[#allocation12 + $0xa4] sm:$0xf]
    %v342 = vld [vmem:[#allocation12 + $0xa8] sm:$0xff]
    %v343 = vld [vmem:[#allocation12 + $0xb0] sm:$0xf]
    %v344 = vld [vmem:[#allocation12 + $0xb4] sm:$0xff]
    %v345 = vld [vmem:[#allocation12 + $0xbc] sm:$0xf]
    %v346 = vld [vmem:[%s5] sm:$0x7]
    %v348 = vperm.slane %v346, 0
    %v349 = vperm.slane %v346, 1
    %v350 = vperm.slane %v346, 2
    %v360 = vunpack.c.l.b16 %v308
    %v361 = vunpack.c.l.b16 %v309
    %v362 = vunpack.c.l.b16 %v310
    %v363 = vunpack.c.l.b16 %v311
    %v364 = vunpack.c.l.b16 %v312
    %v365 = vunpack.c.l.b16 %v313
    %v366 = vpack.c.b16 %v361, %v360
    %v367 = vpack.c.b16 %v363, %v362
    %v368 = vpack.c.b16 %v365, %v364
    %v404 = vunpack.c.l.b16 %v314
    %v405 = vunpack.c.h.b16 %v314
    %v406 = vunpack.c.l.b16 %v315
    %v407 = vunpack.c.l.b16 %v316
    %v408 = vunpack.c.h.b16 %v316
    %v409 = vunpack.c.l.b16 %v317
    %v410 = vunpack.c.l.b16 %v318
    %v411 = vunpack.c.h.b16 %v318
    %v412 = vunpack.c.l.b16 %v319
    %v413 = vunpack.c.l.b16 %v320
    %v414 = vunpack.c.h.b16 %v320
    %v415 = vunpack.c.l.b16 %v321
    %v416 = vunpack.c.l.b16 %v322
    %v417 = vunpack.c.h.b16 %v322
    %v418 = vunpack.c.l.b16 %v323
    %v419 = vunpack.c.l.b16 %v324
    %v420 = vunpack.c.h.b16 %v324
    %v421 = vunpack.c.l.b16 %v325
    %v422 = vunpack.c.l.b16 %v326
    %v423 = vunpack.c.h.b16 %v326
    %v424 = vunpack.c.l.b16 %v327
    %v425 = vunpack.c.l.b16 %v328
    %v426 = vunpack.c.h.b16 %v328
    %v427 = vunpack.c.l.b16 %v329
    %v428 = vunpack.c.l.b16 %v330
    %v429 = vunpack.c.h.b16 %v330
    %v430 = vunpack.c.l.b16 %v331
    %v431 = vunpack.c.l.b16 %v332
    %v432 = vunpack.c.h.b16 %v332
    %v433 = vunpack.c.l.b16 %v333
    %v434 = vunpack.c.l.b16 %v334
    %v435 = vunpack.c.h.b16 %v334
    %v436 = vunpack.c.l.b16 %v335
    %v437 = vunpack.c.l.b16 %v336
    %v438 = vunpack.c.h.b16 %v336
    %v439 = vunpack.c.l.b16 %v337
    %v440 = vunpack.c.l.b16 %v338
    %v441 = vunpack.c.h.b16 %v338
    %v442 = vunpack.c.l.b16 %v339
    %v443 = vunpack.c.l.b16 %v340
    %v444 = vunpack.c.h.b16 %v340
    %v445 = vunpack.c.l.b16 %v341
    %v446 = vunpack.c.l.b16 %v342
    %v447 = vunpack.c.h.b16 %v342
    %v448 = vunpack.c.l.b16 %v343
    %v449 = vunpack.c.l.b16 %v344
    %v450 = vunpack.c.h.b16 %v344
    %v451 = vunpack.c.l.b16 %v345
    %v452 = vpack.c.b16 %v407, %v404
    %v453 = vpack.c.b16 %v408, %v405
    %v454 = vpack.c.b16 %v409, %v406
    %v455 = vpack.c.b16 %v413, %v410
    %v456 = vpack.c.b16 %v414, %v411
    %v457 = vpack.c.b16 %v415, %v412
    %v458 = vpack.c.b16 %v419, %v416
    %v459 = vpack.c.b16 %v420, %v417
    %v460 = vpack.c.b16 %v421, %v418
    %v461 = vpack.c.b16 %v425, %v422
    %v462 = vpack.c.b16 %v426, %v423
    %v463 = vpack.c.b16 %v427, %v424
    %v464 = vpack.c.b16 %v431, %v428
    %v465 = vpack.c.b16 %v432, %v429
    %v466 = vpack.c.b16 %v433, %v430
    %v467 = vpack.c.b16 %v437, %v434
    %v468 = vpack.c.b16 %v438, %v435
    %v469 = vpack.c.b16 %v439, %v436
    %v470 = vpack.c.b16 %v443, %v440
    %v471 = vpack.c.b16 %v444, %v441
    %v472 = vpack.c.b16 %v445, %v442
    %v473 = vpack.c.b16 %v449, %v446
    %v474 = vpack.c.b16 %v450, %v447
    %v475 = vpack.c.b16 %v451, %v448
    %500 = vmatpush.bf16.msra.mxu0 %v473
    %501 = vmatpush.bf16.msra.mxu0 %v470
    %502 = vmatpush.bf16.msra.mxu0 %v467
    %503 = vmatpush.bf16.msra.mxu0 %v464
    %504 = vmatpush.bf16.msra.mxu0 %v461
    %505 = vmatpush.bf16.msra.mxu0 %v458
    %506 = vmatpush.bf16.msra.mxu0 %v455
    %507 = vmatpush.bf16.msra.mxu0 %v452
    %508 = vmatmul.bf16.gmra.mxu0 %v366
    %v509 = vpop.f32.mrf.mxu0
    %v510 = vadd.f32 %v348, %v509
    %v511 = vpop.f32.mrf.mxu0
    %v512 = vadd.f32 %v348, %v511
    %513 = vmatmul.bf16.gmra.mxu0 %v367
    %v514 = vpop.f32.mrf.mxu0
    %v515 = vadd.f32 %v348, %v514
    %v516 = vpop.f32.mrf.mxu0
    %v517 = vadd.f32 %v348, %v516
    %518 = vmatmul.bf16.gmra.mxu0 %v368
    %v519 = vpop.f32.mrf.mxu0
    %v520 = vadd.f32 %v348, %v519
    %v521 = vpop.f32.mrf.mxu0
    %v522 = vadd.f32 %v348, %v521
    %523 = vdwg.mxu0
    %524 = vmatpush.bf16.msra.mxu0 %v474
    %525 = vmatpush.bf16.msra.mxu0 %v471
    %526 = vmatpush.bf16.msra.mxu0 %v468
    %527 = vmatpush.bf16.msra.mxu0 %v465
    %528 = vmatpush.bf16.msra.mxu0 %v462
    %529 = vmatpush.bf16.msra.mxu0 %v459
    %530 = vmatpush.bf16.msra.mxu0 %v456
    %531 = vmatpush.bf16.msra.mxu0 %v453
    %532 = vmatmul.bf16.gmra.mxu0 %v366
    %v533 = vpop.f32.mrf.mxu0
    %v534 = vadd.f32 %v349, %v533
    %v535 = vpop.f32.mrf.mxu0
    %v536 = vadd.f32 %v349, %v535
    %537 = vmatmul.bf16.gmra.mxu0 %v367
    %v538 = vpop.f32.mrf.mxu0
    %v539 = vadd.f32 %v349, %v538
    %v540 = vpop.f32.mrf.mxu0
    %v541 = vadd.f32 %v349, %v540
    %542 = vmatmul.bf16.gmra.mxu0 %v368
    %v543 = vpop.f32.mrf.mxu0
    %v544 = vadd.f32 %v349, %v543
    %v545 = vpop.f32.mrf.mxu0
    %v546 = vadd.f32 %v349, %v545
    %547 = vdwg.mxu0
    %548 = vmatpush.bf16.msra.mxu0 %v475
    %549 = vmatpush.bf16.msra.mxu0 %v472
    %550 = vmatpush.bf16.msra.mxu0 %v469
    %551 = vmatpush.bf16.msra.mxu0 %v466
    %552 = vmatpush.bf16.msra.mxu0 %v463
    %553 = vmatpush.bf16.msra.mxu0 %v460
    %554 = vmatpush.bf16.msra.mxu0 %v457
    %555 = vmatpush.bf16.msra.mxu0 %v454
    %556 = vmatmul.bf16.gmra.mxu0 %v366
    %v557 = vpop.f32.mrf.mxu0
    %v558 = vadd.f32 %v350, %v557
    %v559 = vpop.f32.mrf.mxu0
    %v560 = vadd.f32 %v350, %v559
    %561 = vmatmul.bf16.gmra.mxu0 %v367
    %v562 = vpop.f32.mrf.mxu0
    %v563 = vadd.f32 %v350, %v562
    %v564 = vpop.f32.mrf.mxu0
    %v565 = vadd.f32 %v350, %v564
    %566 = vmatmul.bf16.gmra.mxu0 %v368
    %v567 = vpop.f32.mrf.mxu0
    %v568 = vadd.f32 %v350, %v567
    %v569 = vpop.f32.mrf.mxu0
    %v570 = vadd.f32 %v350, %v569
    %571 = vdwg.mxu0
    %572 = vst [vmem:[#allocation2] sm:$0xff] %v510
    %573 = vst [vmem:[#allocation2 + $0x8] sm:$0xff] %v534
    %574 = vst [vmem:[#allocation2 + $0x10] sm:$0xff] %v558
    %575 = vst [vmem:[#allocation2 + $0x18] sm:$0xff] %v512
    %576 = vst [vmem:[#allocation2 + $0x20] sm:$0xff] %v536
    %577 = vst [vmem:[#allocation2 + $0x28] sm:$0xff] %v560
    %578 = vst [vmem:[#allocation2 + $0x30] sm:$0xff] %v515
    %579 = vst [vmem:[#allocation2 + $0x38] sm:$0xff] %v539
    %580 = vst [vmem:[#allocation2 + $0x40] sm:$0xff] %v563
    %581 = vst [vmem:[#allocation2 + $0x48] sm:$0xff] %v517
    %582 = vst [vmem:[#allocation2 + $0x50] sm:$0xff] %v541
    %583 = vst [vmem:[#allocation2 + $0x58] sm:$0xff] %v565
    %584 = vst [vmem:[#allocation2 + $0x60] sm:$0xff] %v520
    %585 = vst [vmem:[#allocation2 + $0x68] sm:$0xff] %v544
    %586 = vst [vmem:[#allocation2 + $0x70] sm:$0xff] %v568
    %587 = vst [vmem:[#allocation2 + $0x78] sm:$0xff] %v522
    %588 = vst [vmem:[#allocation2 + $0x80] sm:$0xff] %v546
    %589 = vst [vmem:[#allocation2 + $0x88] sm:$0xff] %v570
    %v590 = vld [vmem:[#allocation13] sm:$0xff]
    %v591 = vld [vmem:[#allocation13 + $0x8] sm:$0xf]
    %v592 = vld [vmem:[#allocation13 + $0xc] sm:$0xff]
    %v593 = vld [vmem:[#allocation13 + $0x14] sm:$0xf]
    %v594 = vld [vmem:[#allocation13 + $0x18] sm:$0xff]
    %v595 = vld [vmem:[#allocation13 + $0x20] sm:$0xf]
    %v596 = vld [vmem:[#allocation13 + $0x24] sm:$0xff]
    %v597 = vld [vmem:[#allocation13 + $0x2c] sm:$0xf]
    %v598 = vld [vmem:[#allocation13 + $0x30] sm:$0xff]
    %v599 = vld [vmem:[#allocation13 + $0x38] sm:$0xf]
    %v600 = vld [vmem:[#allocation13 + $0x3c] sm:$0xff]
    %v601 = vld [vmem:[#allocation13 + $0x44] sm:$0xf]
    %v602 = vld [vmem:[#allocation13 + $0x48] sm:$0xff]
    %v603 = vld [vmem:[#allocation13 + $0x50] sm:$0xf]
    %v604 = vld [vmem:[#allocation13 + $0x54] sm:$0xff]
    %v605 = vld [vmem:[#allocation13 + $0x5c] sm:$0xf]
    %v606 = vld [vmem:[#allocation13 + $0x60] sm:$0xff]
    %v607 = vld [vmem:[#allocation13 + $0x68] sm:$0xf]
    %v608 = vld [vmem:[#allocation13 + $0x6c] sm:$0xff]
    %v609 = vld [vmem:[#allocation13 + $0x74] sm:$0xf]
    %v610 = vld [vmem:[#allocation13 + $0x78] sm:$0xff]
    %v611 = vld [vmem:[#allocation13 + $0x80] sm:$0xf]
    %v612 = vld [vmem:[#allocation13 + $0x84] sm:$0xff]
    %v613 = vld [vmem:[#allocation13 + $0x8c] sm:$0xf]
    %v614 = vld [vmem:[#allocation13 + $0x90] sm:$0xff]
    %v615 = vld [vmem:[#allocation13 + $0x98] sm:$0xf]
    %v616 = vld [vmem:[#allocation13 + $0x9c] sm:$0xff]
    %v617 = vld [vmem:[#allocation13 + $0xa4] sm:$0xf]
    %v618 = vld [vmem:[#allocation13 + $0xa8] sm:$0xff]
    %v619 = vld [vmem:[#allocation13 + $0xb0] sm:$0xf]
    %v620 = vld [vmem:[#allocation13 + $0xb4] sm:$0xff]
    %v621 = vld [vmem:[#allocation13 + $0xbc] sm:$0xf]
    %v622 = vld [vmem:[%s7] sm:$0x7]
    %v624 = vperm.slane %v622, 0
    %v625 = vperm.slane %v622, 1
    %v626 = vperm.slane %v622, 2
    %s630 = smul.u32 0, 3
    %s631 = smul.addr %s630, 8
    %s632 = scalar_lea.vmem [#allocation2], %s631
    %v633 = vld [vmem:[%s632] sm:$0xff]
    %v634 = vld [vmem:[%s632 + $0x8] sm:$0xff]
    %v635 = vld [vmem:[%s632 + $0x10] sm:$0xff]
    %v636 = vpack.c.bf16 %v307, %v307
    %v669 = vunpack.c.l.b16 %v590
    %v670 = vunpack.c.h.b16 %v590
    %v671 = vunpack.c.l.b16 %v591
    %v672 = vunpack.c.l.b16 %v592
    %v673 = vunpack.c.h.b16 %v592
    %v674 = vunpack.c.l.b16 %v593
    %v675 = vunpack.c.l.b16 %v594
    %v676 = vunpack.c.h.b16 %v594
    %v677 = vunpack.c.l.b16 %v595
    %v678 = vunpack.c.l.b16 %v596
    %v679 = vunpack.c.h.b16 %v596
    %v680 = vunpack.c.l.b16 %v597
    %v681 = vunpack.c.l.b16 %v598
    %v682 = vunpack.c.h.b16 %v598
    %v683 = vunpack.c.l.b16 %v599
    %v684 = vunpack.c.l.b16 %v600
    %v685 = vunpack.c.h.b16 %v600
    %v686 = vunpack.c.l.b16 %v601
    %v687 = vunpack.c.l.b16 %v602
    %v688 = vunpack.c.h.b16 %v602
    %v689 = vunpack.c.l.b16 %v603
    %v690 = vunpack.c.l.b16 %v604
    %v691 = vunpack.c.h.b16 %v604
    %v692 = vunpack.c.l.b16 %v605
    %v693 = vunpack.c.l.b16 %v606
    %v694 = vunpack.c.h.b16 %v606
    %v695 = vunpack.c.l.b16 %v607
    %v696 = vunpack.c.l.b16 %v608
    %v697 = vunpack.c.h.b16 %v608
    %v698 = vunpack.c.l.b16 %v609
    %v699 = vunpack.c.l.b16 %v610
    %v700 = vunpack.c.h.b16 %v610
    %v701 = vunpack.c.l.b16 %v611
    %v702 = vunpack.c.l.b16 %v612
    %v703 = vunpack.c.h.b16 %v612
    %v704 = vunpack.c.l.b16 %v613
    %v705 = vunpack.c.l.b16 %v614
    %v706 = vunpack.c.h.b16 %v614
    %v707 = vunpack.c.l.b16 %v615
    %v708 = vunpack.c.l.b16 %v616
    %v709 = vunpack.c.h.b16 %v616
    %v710 = vunpack.c.l.b16 %v617
    %v711 = vunpack.c.l.b16 %v618
    %v712 = vunpack.c.h.b16 %v618
    %v713 = vunpack.c.l.b16 %v619
    %v714 = vunpack.c.l.b16 %v620
    %v715 = vunpack.c.h.b16 %v620
    %v716 = vunpack.c.l.b16 %v621
    %v717 = vpack.c.b16 %v672, %v669
    %v718 = vpack.c.b16 %v673, %v670
    %v719 = vpack.c.b16 %v674, %v671
    %v720 = vpack.c.b16 %v678, %v675
    %v721 = vpack.c.b16 %v679, %v676
    %v722 = vpack.c.b16 %v680, %v677
    %v723 = vpack.c.b16 %v684, %v681
    %v724 = vpack.c.b16 %v685, %v682
    %v725 = vpack.c.b16 %v686, %v683
    %v726 = vpack.c.b16 %v690, %v687
    %v727 = vpack.c.b16 %v691, %v688
    %v728 = vpack.c.b16 %v692, %v689
    %v729 = vpack.c.b16 %v696, %v693
    %v730 = vpack.c.b16 %v697, %v694
    %v731 = vpack.c.b16 %v698, %v695
    %v732 = vpack.c.b16 %v702, %v699
    %v733 = vpack.c.b16 %v703, %v700
    %v734 = vpack.c.b16 %v704, %v701
    %v735 = vpack.c.b16 %v708, %v705
    %v736 = vpack.c.b16 %v709, %v706
    %v737 = vpack.c.b16 %v710, %v707
    %v738 = vpack.c.b16 %v714, %v711
    %v739 = vpack.c.b16 %v715, %v712
    %v740 = vpack.c.b16 %v716, %v713
    %765 = vmatpush.bf16.msra.mxu0 %v738
    %766 = vmatpush.bf16.msra.mxu0 %v735
    %767 = vmatpush.bf16.msra.mxu0 %v732
    %768 = vmatpush.bf16.msra.mxu0 %v729
    %769 = vmatpush.bf16.msra.mxu0 %v726
    %770 = vmatpush.bf16.msra.mxu0 %v723
    %771 = vmatpush.bf16.msra.mxu0 %v720
    %772 = vmatpush.bf16.msra.mxu0 %v717
    %773 = vmatmul.bf16.gmra.mxu0 %v636
    %v774 = vpop.f32.mrf.mxu0
    %v775 = vadd.f32 %v624, %v774
    %v776 = vpop.f32.mrf.mxu0
    %777 = vdwg.mxu0
    %778 = vmatpush.bf16.msra.mxu0 %v739
    %779 = vmatpush.bf16.msra.mxu0 %v736
    %780 = vmatpush.bf16.msra.mxu0 %v733
    %781 = vmatpush.bf16.msra.mxu0 %v730
    %782 = vmatpush.bf16.msra.mxu0 %v727
    %783 = vmatpush.bf16.msra.mxu0 %v724
    %784 = vmatpush.bf16.msra.mxu0 %v721
    %785 = vmatpush.bf16.msra.mxu0 %v718
    %786 = vmatmul.bf16.gmra.mxu0 %v636
    %v787 = vpop.f32.mrf.mxu0
    %v788 = vadd.f32 %v625, %v787
    %v789 = vpop.f32.mrf.mxu0
    %790 = vdwg.mxu0
    %791 = vmatpush.bf16.msra.mxu0 %v740
    %792 = vmatpush.bf16.msra.mxu0 %v737
    %793 = vmatpush.bf16.msra.mxu0 %v734
    %794 = vmatpush.bf16.msra.mxu0 %v731
    %795 = vmatpush.bf16.msra.mxu0 %v728
    %796 = vmatpush.bf16.msra.mxu0 %v725
    %797 = vmatpush.bf16.msra.mxu0 %v722
    %798 = vmatpush.bf16.msra.mxu0 %v719
    %799 = vmatmul.bf16.gmra.mxu0 %v636
    %v800 = vpop.f32.mrf.mxu0
    %v801 = vadd.f32 %v626, %v800
    %v802 = vpop.f32.mrf.mxu0
    %803 = vdwg.mxu0
    %v804 = vadd.f32 %v633, %v775
    %v805 = vxor.u32 %v804, 2147483648
    %v806 = vmul.f32 %v805, 1.442695
    %v807 = vpow.pop %v806
    %v808 = vadd.f32 %v807, 1.0
    %v809 = vrcp.pop %v808
    %v810 = vmul.f32 %v808, %v809
    %v811 = vsub.f32 1.0, %v810
    %v812 = vmul.f32 %v809, %v811
    %v813 = vadd.f32 %v809, %v812
    %vm814 = vweird.f32 %v808
    %vm815 = vweird.f32 %v809
    %vm816 = vmor %vm814, %vm815
    %v817 = vsel %vm816, %v809, %v813
    %v818 = vand.u32 2147483647, %v808
    %vm819 = vcmp.eq.f32.partialorder %v818, 8.507059e+37
    %v820 = vand.u32 %v808, 2147483648
    %v821 = vor.u32 1.1754944e-38, %v820
    %v822 = vsel %vm819, %v821, %v817
    %v823 = vmul.f32 1.0, %v822
    %v824 = vadd.f32 %v634, %v788
    %v825 = vxor.u32 %v824, 2147483648
    %v826 = vmul.f32 %v825, 1.442695
    %v827 = vpow.pop %v826
    %v828 = vadd.f32 %v827, 1.0
    %v829 = vrcp.pop %v828
    %v830 = vmul.f32 %v828, %v829
    %v831 = vsub.f32 1.0, %v830
    %v832 = vmul.f32 %v829, %v831
    %v833 = vadd.f32 %v829, %v832
    %vm834 = vweird.f32 %v828
    %vm835 = vweird.f32 %v829
    %vm836 = vmor %vm834, %vm835
    %v837 = vsel %vm836, %v829, %v833
    %v838 = vand.u32 2147483647, %v828
    %vm839 = vcmp.eq.f32.partialorder %v838, 8.507059e+37
    %v840 = vand.u32 %v828, 2147483648
    %v841 = vor.u32 1.1754944e-38, %v840
    %v842 = vsel %vm839, %v841, %v837
    %v843 = vmul.f32 1.0, %v842
    %v844 = vmul.f32 %v823, %v801
    %v845 = vadd.f32 %v635, %v844
    %v846 = vtanh.pop %v845
    %v847 = vsub.f32 1.0, %v843
    %v848 = vmul.f32 %v847, %v846
    %v849 = vmul.f32 %v843, %v307
    %v850 = vadd.f32 %v848, %v849
    %851 = vst [vmem:[#allocation3] sm:$0xff] %v850
    %s852 = smul.u32 1, 3
    %s853 = smul.addr %s852, 8
    %s854 = scalar_lea.vmem [#allocation2], %s853
    %v855 = vld [vmem:[%s854] sm:$0xff]
    %v856 = vld [vmem:[%s854 + $0x8] sm:$0xff]
    %v857 = vld [vmem:[%s854 + $0x10] sm:$0xff]
    %v858 = vpack.c.bf16 %v850, %v850
    %859 = vmatpush.bf16.msra.mxu0 %v738
    %860 = vmatpush.bf16.msra.mxu0 %v735
    %861 = vmatpush.bf16.msra.mxu0 %v732
    %862 = vmatpush.bf16.msra.mxu0 %v729
    %863 = vmatpush.bf16.msra.mxu0 %v726
    %864 = vmatpush.bf16.msra.mxu0 %v723
    %865 = vmatpush.bf16.msra.mxu0 %v720
    %866 = vmatpush.bf16.msra.mxu0 %v717
    %867 = vmatmul.bf16.gmra.mxu0 %v858
    %v868 = vpop.f32.mrf.mxu0
    %v869 = vadd.f32 %v624, %v868
    %v870 = vpop.f32.mrf.mxu0
    %871 = vdwg.mxu0
    %872 = vmatpush.bf16.msra.mxu0 %v739
    %873 = vmatpush.bf16.msra.mxu0 %v736
    %874 = vmatpush.bf16.msra.mxu0 %v733
    %875 = vmatpush.bf16.msra.mxu0 %v730
    %876 = vmatpush.bf16.msra.mxu0 %v727
    %877 = vmatpush.bf16.msra.mxu0 %v724
    %878 = vmatpush.bf16.msra.mxu0 %v721
    %879 = vmatpush.bf16.msra.mxu0 %v718
    %880 = vmatmul.bf16.gmra.mxu0 %v858
    %v881 = vpop.f32.mrf.mxu0
    %v882 = vadd.f32 %v625, %v881
    %v883 = vpop.f32.mrf.mxu0
    %884 = vdwg.mxu0
    %885 = vmatpush.bf16.msra.mxu0 %v740
    %886 = vmatpush.bf16.msra.mxu0 %v737
    %887 = vmatpush.bf16.msra.mxu0 %v734
    %888 = vmatpush.bf16.msra.mxu0 %v731
    %889 = vmatpush.bf16.msra.mxu0 %v728
    %890 = vmatpush.bf16.msra.mxu0 %v725
    %891 = vmatpush.bf16.msra.mxu0 %v722
    %892 = vmatpush.bf16.msra.mxu0 %v719
    %893 = vmatmul.bf16.gmra.mxu0 %v858
    %v894 = vpop.f32.mrf.mxu0
    %v895 = vadd.f32 %v626, %v894
    %v896 = vpop.f32.mrf.mxu0
    %897 = vdwg.mxu0
    %v898 = vadd.f32 %v855, %v869
    %v899 = vxor.u32 %v898, 2147483648
    %v900 = vmul.f32 %v899, 1.442695
    %v901 = vpow.pop %v900
    %v902 = vadd.f32 %v901, 1.0
    %v903 = vrcp.pop %v902
    %v904 = vmul.f32 %v902, %v903
    %v905 = vsub.f32 1.0, %v904
    %v906 = vmul.f32 %v903, %v905
    %v907 = vadd.f32 %v903, %v906
    %vm908 = vweird.f32 %v902
    %vm909 = vweird.f32 %v903
    %vm910 = vmor %vm908, %vm909
    %v911 = vsel %vm910, %v903, %v907
    %v912 = vand.u32 2147483647, %v902
    %vm913 = vcmp.eq.f32.partialorder %v912, 8.507059e+37
    %v914 = vand.u32 %v902, 2147483648
    %v915 = vor.u32 1.1754944e-38, %v914
    %v916 = vsel %vm913, %v915, %v911
    %v917 = vmul.f32 1.0, %v916
    %v918 = vadd.f32 %v856, %v882
    %v919 = vxor.u32 %v918, 2147483648
    %v920 = vmul.f32 %v919, 1.442695
    %v921 = vpow.pop %v920
    %v922 = vadd.f32 %v921, 1.0
    %v923 = vrcp.pop %v922
    %v924 = vmul.f32 %v922, %v923
    %v925 = vsub.f32 1.0, %v924
    %v926 = vmul.f32 %v923, %v925
    %v927 = vadd.f32 %v923, %v926
    %vm928 = vweird.f32 %v922
    %vm929 = vweird.f32 %v923
    %vm930 = vmor %vm928, %vm929
    %v931 = vsel %vm930, %v923, %v927
    %v932 = vand.u32 2147483647, %v922
    %vm933 = vcmp.eq.f32.partialorder %v932, 8.507059e+37
    %v934 = vand.u32 %v922, 2147483648
    %v935 = vor.u32 1.1754944e-38, %v934
    %v936 = vsel %vm933, %v935, %v931
    %v937 = vmul.f32 1.0, %v936
    %v938 = vmul.f32 %v917, %v895
    %v939 = vadd.f32 %v857, %v938
    %v940 = vtanh.pop %v939
    %v941 = vsub.f32 1.0, %v937
    %v942 = vmul.f32 %v941, %v940
    %v943 = vmul.f32 %v937, %v850
    %v944 = vadd.f32 %v942, %v943
    %s945 = scalar_lea.vmem [#allocation3], 8
    %946 = vst [vmem:[%s945] sm:$0xff] %v944
    %s947 = smul.u32 2, 3
    %s948 = smul.addr %s947, 8
    %s949 = scalar_lea.vmem [#allocation2], %s948
    %v950 = vld [vmem:[%s949] sm:$0xff]
    %v951 = vld [vmem:[%s949 + $0x8] sm:$0xff]
    %v952 = vld [vmem:[%s949 + $0x10] sm:$0xff]
    %v953 = vpack.c.bf16 %v944, %v944
    %954 = vmatpush.bf16.msra.mxu0 %v738
    %955 = vmatpush.bf16.msra.mxu0 %v735
    %956 = vmatpush.bf16.msra.mxu0 %v732
    %957 = vmatpush.bf16.msra.mxu0 %v729
    %958 = vmatpush.bf16.msra.mxu0 %v726
    %959 = vmatpush.bf16.msra.mxu0 %v723
    %960 = vmatpush.bf16.msra.mxu0 %v720
    %961 = vmatpush.bf16.msra.mxu0 %v717
    %962 = vmatmul.bf16.gmra.mxu0 %v953
    %v963 = vpop.f32.mrf.mxu0
    %v964 = vadd.f32 %v624, %v963
    %v965 = vpop.f32.mrf.mxu0
    %966 = vdwg.mxu0
    %967 = vmatpush.bf16.msra.mxu0 %v739
    %968 = vmatpush.bf16.msra.mxu0 %v736
    %969 = vmatpush.bf16.msra.mxu0 %v733
    %970 = vmatpush.bf16.msra.mxu0 %v730
    %971 = vmatpush.bf16.msra.mxu0 %v727
    %972 = vmatpush.bf16.msra.mxu0 %v724
    %973 = vmatpush.bf16.msra.mxu0 %v721
    %974 = vmatpush.bf16.msra.mxu0 %v718
    %975 = vmatmul.bf16.gmra.mxu0 %v953
    %v976 = vpop.f32.mrf.mxu0
    %v977 = vadd.f32 %v625, %v976
    %v978 = vpop.f32.mrf.mxu0
    %979 = vdwg.mxu0
    %980 = vmatpush.bf16.msra.mxu0 %v740
    %981 = vmatpush.bf16.msra.mxu0 %v737
    %982 = vmatpush.bf16.msra.mxu0 %v734
    %983 = vmatpush.bf16.msra.mxu0 %v731
    %984 = vmatpush.bf16.msra.mxu0 %v728
    %985 = vmatpush.bf16.msra.mxu0 %v725
    %986 = vmatpush.bf16.msra.mxu0 %v722
    %987 = vmatpush.bf16.msra.mxu0 %v719
    %988 = vmatmul.bf16.gmra.mxu0 %v953
    %v989 = vpop.f32.mrf.mxu0
    %v990 = vadd.f32 %v626, %v989
    %v991 = vpop.f32.mrf.mxu0
    %992 = vdwg.mxu0
    %v993 = vadd.f32 %v950, %v964
    %v994 = vxor.u32 %v993, 2147483648
    %v995 = vmul.f32 %v994, 1.442695
    %v996 = vpow.pop %v995
    %v997 = vadd.f32 %v996, 1.0
    %v998 = vrcp.pop %v997
    %v999 = vmul.f32 %v997, %v998
    %v1000 = vsub.f32 1.0, %v999
    %v1001 = vmul.f32 %v998, %v1000
    %v1002 = vadd.f32 %v998, %v1001
    %vm1003 = vweird.f32 %v997
    %vm1004 = vweird.f32 %v998
    %vm1005 = vmor %vm1003, %vm1004
    %v1006 = vsel %vm1005, %v998, %v1002
    %v1007 = vand.u32 2147483647, %v997
    %vm1008 = vcmp.eq.f32.partialorder %v1007, 8.507059e+37
    %v1009 = vand.u32 %v997, 2147483648
    %v1010 = vor.u32 1.1754944e-38, %v1009
    %v1011 = vsel %vm1008, %v1010, %v1006
    %v1012 = vmul.f32 1.0, %v1011
    %v1013 = vadd.f32 %v951, %v977
    %v1014 = vxor.u32 %v1013, 2147483648
    %v1015 = vmul.f32 %v1014, 1.442695
    %v1016 = vpow.pop %v1015
    %v1017 = vadd.f32 %v1016, 1.0
    %v1018 = vrcp.pop %v1017
    %v1019 = vmul.f32 %v1017, %v1018
    %v1020 = vsub.f32 1.0, %v1019
    %v1021 = vmul.f32 %v1018, %v1020
    %v1022 = vadd.f32 %v1018, %v1021
    %vm1023 = vweird.f32 %v1017
    %vm1024 = vweird.f32 %v1018
    %vm1025 = vmor %vm1023, %vm1024
    %v1026 = vsel %vm1025, %v1018, %v1022
    %v1027 = vand.u32 2147483647, %v1017
    %vm1028 = vcmp.eq.f32.partialorder %v1027, 8.507059e+37
    %v1029 = vand.u32 %v1017, 2147483648
    %v1030 = vor.u32 1.1754944e-38, %v1029
    %v1031 = vsel %vm1028, %v1030, %v1026
    %v1032 = vmul.f32 1.0, %v1031
    %v1033 = vmul.f32 %v1012, %v990
    %v1034 = vadd.f32 %v952, %v1033
    %v1035 = vtanh.pop %v1034
    %v1036 = vsub.f32 1.0, %v1032
    %v1037 = vmul.f32 %v1036, %v1035
    %v1038 = vmul.f32 %v1032, %v944
    %v1039 = vadd.f32 %v1037, %v1038
    %s1040 = scalar_lea.vmem [#allocation3], 16
    %1041 = vst [vmem:[%s1040] sm:$0xff] %v1039
    %s1042 = smul.u32 3, 3
    %s1043 = smul.addr %s1042, 8
    %s1044 = scalar_lea.vmem [#allocation2], %s1043
    %v1045 = vld [vmem:[%s1044] sm:$0xff]
    %v1046 = vld [vmem:[%s1044 + $0x8] sm:$0xff]
    %v1047 = vld [vmem:[%s1044 + $0x10] sm:$0xff]
    %v1048 = vpack.c.bf16 %v1039, %v1039
    %1049 = vmatpush.bf16.msra.mxu0 %v738
    %1050 = vmatpush.bf16.msra.mxu0 %v735
    %1051 = vmatpush.bf16.msra.mxu0 %v732
    %1052 = vmatpush.bf16.msra.mxu0 %v729
    %1053 = vmatpush.bf16.msra.mxu0 %v726
    %1054 = vmatpush.bf16.msra.mxu0 %v723
    %1055 = vmatpush.bf16.msra.mxu0 %v720
    %1056 = vmatpush.bf16.msra.mxu0 %v717
    %1057 = vmatmul.bf16.gmra.mxu0 %v1048
    %v1058 = vpop.f32.mrf.mxu0
    %v1059 = vadd.f32 %v624, %v1058
    %v1060 = vpop.f32.mrf.mxu0
    %1061 = vdwg.mxu0
    %1062 = vmatpush.bf16.msra.mxu0 %v739
    %1063 = vmatpush.bf16.msra.mxu0 %v736
    %1064 = vmatpush.bf16.msra.mxu0 %v733
    %1065 = vmatpush.bf16.msra.mxu0 %v730
    %1066 = vmatpush.bf16.msra.mxu0 %v727
    %1067 = vmatpush.bf16.msra.mxu0 %v724
    %1068 = vmatpush.bf16.msra.mxu0 %v721
    %1069 = vmatpush.bf16.msra.mxu0 %v718
    %1070 = vmatmul.bf16.gmra.mxu0 %v1048
    %v1071 = vpop.f32.mrf.mxu0
    %v1072 = vadd.f32 %v625, %v1071
    %v1073 = vpop.f32.mrf.mxu0
    %1074 = vdwg.mxu0
    %1075 = vmatpush.bf16.msra.mxu0 %v740
    %1076 = vmatpush.bf16.msra.mxu0 %v737
    %1077 = vmatpush.bf16.msra.mxu0 %v734
    %1078 = vmatpush.bf16.msra.mxu0 %v731
    %1079 = vmatpush.bf16.msra.mxu0 %v728
    %1080 = vmatpush.bf16.msra.mxu0 %v725
    %1081 = vmatpush.bf16.msra.mxu0 %v722
    %1082 = vmatpush.bf16.msra.mxu0 %v719
    %1083 = vmatmul.bf16.gmra.mxu0 %v1048
    %v1084 = vpop.f32.mrf.mxu0
    %v1085 = vadd.f32 %v626, %v1084
    %v1086 = vpop.f32.mrf.mxu0
    %1087 = vdwg.mxu0
    %v1088 = vadd.f32 %v1045, %v1059
    %v1089 = vxor.u32 %v1088, 2147483648
    %v1090 = vmul.f32 %v1089, 1.442695
    %v1091 = vpow.pop %v1090
    %v1092 = vadd.f32 %v1091, 1.0
    %v1093 = vrcp.pop %v1092
    %v1094 = vmul.f32 %v1092, %v1093
    %v1095 = vsub.f32 1.0, %v1094
    %v1096 = vmul.f32 %v1093, %v1095
    %v1097 = vadd.f32 %v1093, %v1096
    %vm1098 = vweird.f32 %v1092
    %vm1099 = vweird.f32 %v1093
    %vm1100 = vmor %vm1098, %vm1099
    %v1101 = vsel %vm1100, %v1093, %v1097
    %v1102 = vand.u32 2147483647, %v1092
    %vm1103 = vcmp.eq.f32.partialorder %v1102, 8.507059e+37
    %v1104 = vand.u32 %v1092, 2147483648
    %v1105 = vor.u32 1.1754944e-38, %v1104
    %v1106 = vsel %vm1103, %v1105, %v1101
    %v1107 = vmul.f32 1.0, %v1106
    %v1108 = vadd.f32 %v1046, %v1072
    %v1109 = vxor.u32 %v1108, 2147483648
    %v1110 = vmul.f32 %v1109, 1.442695
    %v1111 = vpow.pop %v1110
    %v1112 = vadd.f32 %v1111, 1.0
    %v1113 = vrcp.pop %v1112
    %v1114 = vmul.f32 %v1112, %v1113
    %v1115 = vsub.f32 1.0, %v1114
    %v1116 = vmul.f32 %v1113, %v1115
    %v1117 = vadd.f32 %v1113, %v1116
    %vm1118 = vweird.f32 %v1112
    %vm1119 = vweird.f32 %v1113
    %vm1120 = vmor %vm1118, %vm1119
    %v1121 = vsel %vm1120, %v1113, %v1117
    %v1122 = vand.u32 2147483647, %v1112
    %vm1123 = vcmp.eq.f32.partialorder %v1122, 8.507059e+37
    %v1124 = vand.u32 %v1112, 2147483648
    %v1125 = vor.u32 1.1754944e-38, %v1124
    %v1126 = vsel %vm1123, %v1125, %v1121
    %v1127 = vmul.f32 1.0, %v1126
    %v1128 = vmul.f32 %v1107, %v1085
    %v1129 = vadd.f32 %v1047, %v1128
    %v1130 = vtanh.pop %v1129
    %v1131 = vsub.f32 1.0, %v1127
    %v1132 = vmul.f32 %v1131, %v1130
    %v1133 = vmul.f32 %v1127, %v1039
    %v1134 = vadd.f32 %v1132, %v1133
    %s1135 = scalar_lea.vmem [#allocation3], 24
    %1136 = vst [vmem:[%s1135] sm:$0xff] %v1134
    %s1137 = smul.u32 4, 3
    %s1138 = smul.addr %s1137, 8
    %s1139 = scalar_lea.vmem [#allocation2], %s1138
    %v1140 = vld [vmem:[%s1139] sm:$0xff]
    %v1141 = vld [vmem:[%s1139 + $0x8] sm:$0xff]
    %v1142 = vld [vmem:[%s1139 + $0x10] sm:$0xff]
    %v1143 = vpack.c.bf16 %v1134, %v1134
    %1144 = vmatpush.bf16.msra.mxu0 %v738
    %1145 = vmatpush.bf16.msra.mxu0 %v735
    %1146 = vmatpush.bf16.msra.mxu0 %v732
    %1147 = vmatpush.bf16.msra.mxu0 %v729
    %1148 = vmatpush.bf16.msra.mxu0 %v726
    %1149 = vmatpush.bf16.msra.mxu0 %v723
    %1150 = vmatpush.bf16.msra.mxu0 %v720
    %1151 = vmatpush.bf16.msra.mxu0 %v717
    %1152 = vmatmul.bf16.gmra.mxu0 %v1143
    %v1153 = vpop.f32.mrf.mxu0
    %v1154 = vadd.f32 %v624, %v1153
    %v1155 = vpop.f32.mrf.mxu0
    %1156 = vdwg.mxu0
    %1157 = vmatpush.bf16.msra.mxu0 %v739
    %1158 = vmatpush.bf16.msra.mxu0 %v736
    %1159 = vmatpush.bf16.msra.mxu0 %v733
    %1160 = vmatpush.bf16.msra.mxu0 %v730
    %1161 = vmatpush.bf16.msra.mxu0 %v727
    %1162 = vmatpush.bf16.msra.mxu0 %v724
    %1163 = vmatpush.bf16.msra.mxu0 %v721
    %1164 = vmatpush.bf16.msra.mxu0 %v718
    %1165 = vmatmul.bf16.gmra.mxu0 %v1143
    %v1166 = vpop.f32.mrf.mxu0
    %v1167 = vadd.f32 %v625, %v1166
    %v1168 = vpop.f32.mrf.mxu0
    %1169 = vdwg.mxu0
    %1170 = vmatpush.bf16.msra.mxu0 %v740
    %1171 = vmatpush.bf16.msra.mxu0 %v737
    %1172 = vmatpush.bf16.msra.mxu0 %v734
    %1173 = vmatpush.bf16.msra.mxu0 %v731
    %1174 = vmatpush.bf16.msra.mxu0 %v728
    %1175 = vmatpush.bf16.msra.mxu0 %v725
    %1176 = vmatpush.bf16.msra.mxu0 %v722
    %1177 = vmatpush.bf16.msra.mxu0 %v719
    %1178 = vmatmul.bf16.gmra.mxu0 %v1143
    %v1179 = vpop.f32.mrf.mxu0
    %v1180 = vadd.f32 %v626, %v1179
    %v1181 = vpop.f32.mrf.mxu0
    %1182 = vdwg.mxu0
    %v1183 = vadd.f32 %v1140, %v1154
    %v1184 = vxor.u32 %v1183, 2147483648
    %v1185 = vmul.f32 %v1184, 1.442695
    %v1186 = vpow.pop %v1185
    %v1187 = vadd.f32 %v1186, 1.0
    %v1188 = vrcp.pop %v1187
    %v1189 = vmul.f32 %v1187, %v1188
    %v1190 = vsub.f32 1.0, %v1189
    %v1191 = vmul.f32 %v1188, %v1190
    %v1192 = vadd.f32 %v1188, %v1191
    %vm1193 = vweird.f32 %v1187
    %vm1194 = vweird.f32 %v1188
    %vm1195 = vmor %vm1193, %vm1194
    %v1196 = vsel %vm1195, %v1188, %v1192
    %v1197 = vand.u32 2147483647, %v1187
    %vm1198 = vcmp.eq.f32.partialorder %v1197, 8.507059e+37
    %v1199 = vand.u32 %v1187, 2147483648
    %v1200 = vor.u32 1.1754944e-38, %v1199
    %v1201 = vsel %vm1198, %v1200, %v1196
    %v1202 = vmul.f32 1.0, %v1201
    %v1203 = vadd.f32 %v1141, %v1167
    %v1204 = vxor.u32 %v1203, 2147483648
    %v1205 = vmul.f32 %v1204, 1.442695
    %v1206 = vpow.pop %v1205
    %v1207 = vadd.f32 %v1206, 1.0
    %v1208 = vrcp.pop %v1207
    %v1209 = vmul.f32 %v1207, %v1208
    %v1210 = vsub.f32 1.0, %v1209
    %v1211 = vmul.f32 %v1208, %v1210
    %v1212 = vadd.f32 %v1208, %v1211
    %vm1213 = vweird.f32 %v1207
    %vm1214 = vweird.f32 %v1208
    %vm1215 = vmor %vm1213, %vm1214
    %v1216 = vsel %vm1215, %v1208, %v1212
    %v1217 = vand.u32 2147483647, %v1207
    %vm1218 = vcmp.eq.f32.partialorder %v1217, 8.507059e+37
    %v1219 = vand.u32 %v1207, 2147483648
    %v1220 = vor.u32 1.1754944e-38, %v1219
    %v1221 = vsel %vm1218, %v1220, %v1216
    %v1222 = vmul.f32 1.0, %v1221
    %v1223 = vmul.f32 %v1202, %v1180
    %v1224 = vadd.f32 %v1142, %v1223
    %v1225 = vtanh.pop %v1224
    %v1226 = vsub.f32 1.0, %v1222
    %v1227 = vmul.f32 %v1226, %v1225
    %v1228 = vmul.f32 %v1222, %v1134
    %v1229 = vadd.f32 %v1227, %v1228
    %s1230 = scalar_lea.vmem [#allocation3], 32
    %1231 = vst [vmem:[%s1230] sm:$0xff] %v1229
    %s1232 = smul.u32 5, 3
    %s1233 = smul.addr %s1232, 8
    %s1234 = scalar_lea.vmem [#allocation2], %s1233
    %v1235 = vld [vmem:[%s1234] sm:$0xff]
    %v1236 = vld [vmem:[%s1234 + $0x8] sm:$0xff]
    %v1237 = vld [vmem:[%s1234 + $0x10] sm:$0xff]
    %v1238 = vpack.c.bf16 %v1229, %v1229
    %1239 = vmatpush.bf16.msra.mxu0 %v738
    %1240 = vmatpush.bf16.msra.mxu0 %v735
    %1241 = vmatpush.bf16.msra.mxu0 %v732
    %1242 = vmatpush.bf16.msra.mxu0 %v729
    %1243 = vmatpush.bf16.msra.mxu0 %v726
    %1244 = vmatpush.bf16.msra.mxu0 %v723
    %1245 = vmatpush.bf16.msra.mxu0 %v720
    %1246 = vmatpush.bf16.msra.mxu0 %v717
    %1247 = vmatmul.bf16.gmra.mxu0 %v1238
    %v1248 = vpop.f32.mrf.mxu0
    %v1249 = vadd.f32 %v624, %v1248
    %v1250 = vpop.f32.mrf.mxu0
    %1251 = vdwg.mxu0
    %1252 = vmatpush.bf16.msra.mxu0 %v739
    %1253 = vmatpush.bf16.msra.mxu0 %v736
    %1254 = vmatpush.bf16.msra.mxu0 %v733
    %1255 = vmatpush.bf16.msra.mxu0 %v730
    %1256 = vmatpush.bf16.msra.mxu0 %v727
    %1257 = vmatpush.bf16.msra.mxu0 %v724
    %1258 = vmatpush.bf16.msra.mxu0 %v721
    %1259 = vmatpush.bf16.msra.mxu0 %v718
    %1260 = vmatmul.bf16.gmra.mxu0 %v1238
    %v1261 = vpop.f32.mrf.mxu0
    %v1262 = vadd.f32 %v625, %v1261
    %v1263 = vpop.f32.mrf.mxu0
    %1264 = vdwg.mxu0
    %1265 = vmatpush.bf16.msra.mxu0 %v740
    %1266 = vmatpush.bf16.msra.mxu0 %v737
    %1267 = vmatpush.bf16.msra.mxu0 %v734
    %1268 = vmatpush.bf16.msra.mxu0 %v731
    %1269 = vmatpush.bf16.msra.mxu0 %v728
    %1270 = vmatpush.bf16.msra.mxu0 %v725
    %1271 = vmatpush.bf16.msra.mxu0 %v722
    %1272 = vmatpush.bf16.msra.mxu0 %v719
    %1273 = vmatmul.bf16.gmra.mxu0 %v1238
    %v1274 = vpop.f32.mrf.mxu0
    %v1275 = vadd.f32 %v626, %v1274
    %v1276 = vpop.f32.mrf.mxu0
    %1277 = vdwg.mxu0
    %v1278 = vadd.f32 %v1235, %v1249
    %v1279 = vxor.u32 %v1278, 2147483648
    %v1280 = vmul.f32 %v1279, 1.442695
    %v1281 = vpow.pop %v1280
    %v1282 = vadd.f32 %v1281, 1.0
    %v1283 = vrcp.pop %v1282
    %v1284 = vmul.f32 %v1282, %v1283
    %v1285 = vsub.f32 1.0, %v1284
    %v1286 = vmul.f32 %v1283, %v1285
    %v1287 = vadd.f32 %v1283, %v1286
    %vm1288 = vweird.f32 %v1282
    %vm1289 = vweird.f32 %v1283
    %vm1290 = vmor %vm1288, %vm1289
    %v1291 = vsel %vm1290, %v1283, %v1287
    %v1292 = vand.u32 2147483647, %v1282
    %vm1293 = vcmp.eq.f32.partialorder %v1292, 8.507059e+37
    %v1294 = vand.u32 %v1282, 2147483648
    %v1295 = vor.u32 1.1754944e-38, %v1294
    %v1296 = vsel %vm1293, %v1295, %v1291
    %v1297 = vmul.f32 1.0, %v1296
    %v1298 = vadd.f32 %v1236, %v1262
    %v1299 = vxor.u32 %v1298, 2147483648
    %v1300 = vmul.f32 %v1299, 1.442695
    %v1301 = vpow.pop %v1300
    %v1302 = vadd.f32 %v1301, 1.0
    %v1303 = vrcp.pop %v1302
    %v1304 = vmul.f32 %v1302, %v1303
    %v1305 = vsub.f32 1.0, %v1304
    %v1306 = vmul.f32 %v1303, %v1305
    %v1307 = vadd.f32 %v1303, %v1306
    %vm1308 = vweird.f32 %v1302
    %vm1309 = vweird.f32 %v1303
    %vm1310 = vmor %vm1308, %vm1309
    %v1311 = vsel %vm1310, %v1303, %v1307
    %v1312 = vand.u32 2147483647, %v1302
    %vm1313 = vcmp.eq.f32.partialorder %v1312, 8.507059e+37
    %v1314 = vand.u32 %v1302, 2147483648
    %v1315 = vor.u32 1.1754944e-38, %v1314
    %v1316 = vsel %vm1313, %v1315, %v1311
    %v1317 = vmul.f32 1.0, %v1316
    %v1318 = vmul.f32 %v1297, %v1275
    %v1319 = vadd.f32 %v1237, %v1318
    %v1320 = vtanh.pop %v1319
    %v1321 = vsub.f32 1.0, %v1317
    %v1322 = vmul.f32 %v1321, %v1320
    %v1323 = vmul.f32 %v1317, %v1229
    %v1324 = vadd.f32 %v1322, %v1323
    %s1325 = scalar_lea.vmem [#allocation3], 40
    %1326 = vst [vmem:[%s1325] sm:$0xff] %v1324
    %v1327 = vld [vmem:[#allocation3] sm:$0xff]
    %v1328 = vld [vmem:[#allocation3 + $0x8] sm:$0xff]
    %v1329 = vld [vmem:[#allocation3 + $0x10] sm:$0xff]
    %v1330 = vld [vmem:[#allocation3 + $0x18] sm:$0xff]
    %v1331 = vld [vmem:[#allocation3 + $0x20] sm:$0xff]
    %v1332 = vld [vmem:[#allocation3 + $0x28] sm:$0xff]
    %1333 = vst [vmem:[#allocation16] sm:$0xff] %v1327
    %1334 = vst [vmem:[#allocation16 + $0x8] sm:$0xff] %v1328
    %1335 = vst [vmem:[#allocation16 + $0x10] sm:$0xff] %v1329
    %1336 = vst [vmem:[#allocation16 + $0x18] sm:$0xff] %v1330
    %1337 = vst [vmem:[#allocation16 + $0x20] sm:$0xff] %v1331
    %1338 = vst [vmem:[#allocation16 + $0x28] sm:$0xff] %v1332
    %v1339 = vld [vmem:[#allocation3] sm:$0xff]
    %v1340 = vld [vmem:[#allocation3 + $0x8] sm:$0xff]
    %v1341 = vld [vmem:[#allocation3 + $0x10] sm:$0xff]
    %v1342 = vld [vmem:[#allocation3 + $0x18] sm:$0xff]
    %v1343 = vld [vmem:[#allocation3 + $0x20] sm:$0xff]
    %v1344 = vld [vmem:[#allocation3 + $0x28] sm:$0xff]
    %v1345 = vpack.c.bf16 %v1340, %v1339
    %v1346 = vpack.c.bf16 %v1342, %v1341
    %v1347 = vpack.c.bf16 %v1344, %v1343
    %v1348 = vld [vmem:[#allocation15] sm:$0xff]
    %v1349 = vld [vmem:[#allocation15 + $0x8] sm:$0xff]
    %v1350 = vld [vmem:[#allocation15 + $0x10] sm:$0xff]
    %v1351 = vld [vmem:[#allocation15 + $0x18] sm:$0xff]
    %v1352 = vld [vmem:[#allocation15 + $0x20] sm:$0xff]
    %v1353 = vld [vmem:[#allocation15 + $0x28] sm:$0xff]
    %v1354 = vld [vmem:[#allocation15 + $0x30] sm:$0xff]
    %v1355 = vld [vmem:[#allocation15 + $0x38] sm:$0xff]
    %v1356 = vld [vmem:[#allocation15 + $0x40] sm:$0xff]
    %v1357 = vld [vmem:[#allocation15 + $0x48] sm:$0xff]
    %v1358 = vld [vmem:[#allocation15 + $0x50] sm:$0xff]
    %v1359 = vld [vmem:[#allocation15 + $0x58] sm:$0xff]
    %v1360 = vld [vmem:[#allocation15 + $0x60] sm:$0xff]
    %v1361 = vld [vmem:[#allocation15 + $0x68] sm:$0xff]
    %v1362 = vld [vmem:[#allocation15 + $0x70] sm:$0xff]
    %v1363 = vld [vmem:[#allocation15 + $0x78] sm:$0xff]
    %v1380 = vunpack.c.l.b16 %v1348
    %v1381 = vunpack.c.h.b16 %v1348
    %v1382 = vunpack.c.l.b16 %v1349
    %v1383 = vunpack.c.h.b16 %v1349
    %v1384 = vunpack.c.l.b16 %v1350
    %v1385 = vunpack.c.h.b16 %v1350
    %v1386 = vunpack.c.l.b16 %v1351
    %v1387 = vunpack.c.h.b16 %v1351
    %v1388 = vunpack.c.l.b16 %v1352
    %v1389 = vunpack.c.h.b16 %v1352
    %v1390 = vunpack.c.l.b16 %v1353
    %v1391 = vunpack.c.h.b16 %v1353
    %v1392 = vunpack.c.l.b16 %v1354
    %v1393 = vunpack.c.h.b16 %v1354
    %v1394 = vunpack.c.l.b16 %v1355
    %v1395 = vunpack.c.h.b16 %v1355
    %v1396 = vunpack.c.l.b16 %v1356
    %v1397 = vunpack.c.h.b16 %v1356
    %v1398 = vunpack.c.l.b16 %v1357
    %v1399 = vunpack.c.h.b16 %v1357
    %v1400 = vunpack.c.l.b16 %v1358
    %v1401 = vunpack.c.h.b16 %v1358
    %v1402 = vunpack.c.l.b16 %v1359
    %v1403 = vunpack.c.h.b16 %v1359
    %v1404 = vunpack.c.l.b16 %v1360
    %v1405 = vunpack.c.h.b16 %v1360
    %v1406 = vunpack.c.l.b16 %v1361
    %v1407 = vunpack.c.h.b16 %v1361
    %v1408 = vunpack.c.l.b16 %v1362
    %v1409 = vunpack.c.h.b16 %v1362
    %v1410 = vunpack.c.l.b16 %v1363
    %v1411 = vunpack.c.h.b16 %v1363
    %v1412 = vpack.c.b16 %v1382, %v1380
    %v1413 = vpack.c.b16 %v1383, %v1381
    %v1414 = vpack.c.b16 %v1386, %v1384
    %v1415 = vpack.c.b16 %v1387, %v1385
    %v1416 = vpack.c.b16 %v1390, %v1388
    %v1417 = vpack.c.b16 %v1391, %v1389
    %v1418 = vpack.c.b16 %v1394, %v1392
    %v1419 = vpack.c.b16 %v1395, %v1393
    %v1420 = vpack.c.b16 %v1398, %v1396
    %v1421 = vpack.c.b16 %v1399, %v1397
    %v1422 = vpack.c.b16 %v1402, %v1400
    %v1423 = vpack.c.b16 %v1403, %v1401
    %v1424 = vpack.c.b16 %v1406, %v1404
    %v1425 = vpack.c.b16 %v1407, %v1405
    %v1426 = vpack.c.b16 %v1410, %v1408
    %v1427 = vpack.c.b16 %v1411, %v1409
    %1444 = vmatpush.bf16.msra.mxu0 %v1426
    %1445 = vmatpush.bf16.msra.mxu0 %v1424
    %1446 = vmatpush.bf16.msra.mxu0 %v1422
    %1447 = vmatpush.bf16.msra.mxu0 %v1420
    %1448 = vmatpush.bf16.msra.mxu0 %v1418
    %1449 = vmatpush.bf16.msra.mxu0 %v1416
    %1450 = vmatpush.bf16.msra.mxu0 %v1414
    %1451 = vmatpush.bf16.msra.mxu0 %v1412
    %1452 = vmatmul.bf16.gmra.mxu0 %v1345
    %v1453 = vpop.f32.mrf.mxu0
    %v1454 = vadd.f32 0.0, %v1453
    %v1455 = vpop.f32.mrf.mxu0
    %v1456 = vadd.f32 0.0, %v1455
    %1457 = vmatmul.bf16.gmra.mxu0 %v1346
    %v1458 = vpop.f32.mrf.mxu0
    %v1459 = vadd.f32 0.0, %v1458
    %v1460 = vpop.f32.mrf.mxu0
    %v1461 = vadd.f32 0.0, %v1460
    %1462 = vmatmul.bf16.gmra.mxu0 %v1347
    %v1463 = vpop.f32.mrf.mxu0
    %v1464 = vadd.f32 0.0, %v1463
    %v1465 = vpop.f32.mrf.mxu0
    %v1466 = vadd.f32 0.0, %v1465
    %1467 = vdwg.mxu0
    %1468 = vmatpush.bf16.msra.mxu0 %v1427
    %1469 = vmatpush.bf16.msra.mxu0 %v1425
    %1470 = vmatpush.bf16.msra.mxu0 %v1423
    %1471 = vmatpush.bf16.msra.mxu0 %v1421
    %1472 = vmatpush.bf16.msra.mxu0 %v1419
    %1473 = vmatpush.bf16.msra.mxu0 %v1417
    %1474 = vmatpush.bf16.msra.mxu0 %v1415
    %1475 = vmatpush.bf16.msra.mxu0 %v1413
    %1476 = vmatmul.bf16.gmra.mxu0 %v1345
    %v1477 = vpop.f32.mrf.mxu0
    %v1478 = vadd.f32 0.0, %v1477
    %v1479 = vpop.f32.mrf.mxu0
    %v1480 = vadd.f32 0.0, %v1479
    %1481 = vmatmul.bf16.gmra.mxu0 %v1346
    %v1482 = vpop.f32.mrf.mxu0
    %v1483 = vadd.f32 0.0, %v1482
    %v1484 = vpop.f32.mrf.mxu0
    %v1485 = vadd.f32 0.0, %v1484
    %1486 = vmatmul.bf16.gmra.mxu0 %v1347
    %v1487 = vpop.f32.mrf.mxu0
    %v1488 = vadd.f32 0.0, %v1487
    %v1489 = vpop.f32.mrf.mxu0
    %v1490 = vadd.f32 0.0, %v1489
    %1491 = vdwg.mxu0
    %1492 = vst [vmem:[#allocation17] sm:$0xff] %v1454
    %1493 = vst [vmem:[#allocation17 + $0x8] sm:$0xff] %v1478
    %1494 = vst [vmem:[#allocation17 + $0x10] sm:$0xff] %v1456
    %1495 = vst [vmem:[#allocation17 + $0x18] sm:$0xff] %v1480
    %1496 = vst [vmem:[#allocation17 + $0x20] sm:$0xff] %v1459
    %1497 = vst [vmem:[#allocation17 + $0x28] sm:$0xff] %v1483
    %1498 = vst [vmem:[#allocation17 + $0x30] sm:$0xff] %v1461
    %1499 = vst [vmem:[#allocation17 + $0x38] sm:$0xff] %v1485
    %1500 = vst [vmem:[#allocation17 + $0x40] sm:$0xff] %v1464
    %1501 = vst [vmem:[#allocation17 + $0x48] sm:$0xff] %v1488
    %1502 = vst [vmem:[#allocation17 + $0x50] sm:$0xff] %v1466
    %1503 = vst [vmem:[#allocation17 + $0x58] sm:$0xff] %v1490
    // Predicated region
    $region66: #{tpu_custom_call.1} parent=1 // pred_check
      _
    $region67: #{tpu_custom_call.1} parent=1 // pred_check_branch
      %1505 = sbr.rel (0) target = $region69
    $region68: #{tpu_custom_call.1} parent=1 // pred_region
      %1507 = vsyncadd [#allocation6], 0
      %s1508 = sshll.u32 [#allocation16], 4
      %s1509 = int_to_ptr.vmem [resolvable:$true] %s1508
      %s1510 = sshll.u32 %s9, 4
      %s1511 = int_to_ptr.hbm [resolvable:$true] %s1510
      %1516 = dma.vmem_to_hbm [thread:$0]  %s1509, 768, %s1511, [#allocation6], 128, 128, 8
    $region69: #{tpu_custom_call.1} parent=1 // pred_fallthru
      _
    // Predicated region
    $region70: #{tpu_custom_call.1} parent=1 // pred_check
      _
    $region71: #{tpu_custom_call.1} parent=1 // pred_check_branch
      %1518 = sbr.rel (0) target = $region73
    $region72: #{tpu_custom_call.1} parent=1 // pred_region
      %1520 = vsyncadd [#allocation18], 0
      %s1521 = sshll.u32 [#allocation17], 4
      %s1522 = int_to_ptr.vmem [resolvable:$true] %s1521
      %s1523 = sshll.u32 %s10, 4
      %s1524 = int_to_ptr.hbm [resolvable:$true] %s1523
      %1529 = dma.vmem_to_hbm [thread:$0]  %s1522, 1536, %s1524, [#allocation18], 256, 256, 16
    $region73: #{tpu_custom_call.1} parent=1 // pred_fallthru
      _
    // Predicated region
    $region74: #{tpu_custom_call.1} parent=1 // pred_check
      _
    $region75: #{tpu_custom_call.1} parent=1 // pred_check_branch
      %1531 = sbr.rel (0) target = $region77
    $region76: #{tpu_custom_call.1} parent=1 // pred_region
      %1533 = dma.done [#allocation6], 768
    $region77: #{tpu_custom_call.1} parent=1 // pred_fallthru
      _
    // Predicated region
    $region78: #{tpu_custom_call.1} parent=1 // pred_check
      _
    $region79: #{tpu_custom_call.1} parent=1 // pred_check_branch
      %1535 = sbr.rel (0) target = $region81
    $region80: #{tpu_custom_call.1} parent=1 // pred_region
      %1537 = dma.done [#allocation18], 1536
    $region81: #{tpu_custom_call.1} parent=1 // pred_fallthru
      _
    %1538 = vsyncpa [#allocation5], 1
    %1539 = vsyncpa [#allocation8], 1
    %1540 = vsyncpa [#allocation11], 1
    %1541 = vsyncpa [#allocation14], 1
    %1542 = vsyncpa [#allocation6], 1
    %1543 = vsyncpa [#allocation18], 1

</llo_original>
